<compile_context>
chip_gen: v7x
topology: tpu7x:2x2x1
jax: 0.10.0
libtpu: 0.0.40
codegen_flags: <defaults>
</compile_context>

<pallas_src>
import functools

import jax
import jax.numpy as jnp
from jax.experimental import pallas as pl
from jax.experimental.pallas import tpu as pltpu


def _lvvcp_kernel(wflow_ref, wfuse_ref, full_ref, cur_ref, out_ref,
                  *, Himg, Wimg, TILE, occl_a1, occl_a2):
    """One output-pixel tile of the flow-candidate + fusion pipeline.

    wflow_ref : SMEM [2, 2]  effective flow-head weights (gray-channel folded)
    wfuse_ref : SMEM [3, 6]  fusion residual weights
    full_ref  : VMEM [5, HW] full-resident source slab: i0c (3), i0g (1), i1g (1)
    cur_ref   : VMEM [3, T]  per-tile current-frame slab: i1L, i1g, i0g
    out_ref   : VMEM [16, T] packed outputs: rows 0-2 x_colorized, 3-5 i0cw,
                6-7 flow10, 8 fdelta10, 9 matched10_hard, 10-15 zero pad
    """
    f32 = jnp.float32
    bf16 = jnp.bfloat16
    HW = Himg * Wimg
    t = pl.program_id(0)

    # flow-head weights (channel sums folded in the wrapper; gray is 3x dup).
    a_cur0 = wflow_ref[0, 0]
    a_prev0 = wflow_ref[0, 1]
    a_cur1 = wflow_ref[1, 0]
    a_prev1 = wflow_ref[1, 1]

    # ---- full-image source slab ---------------------------------------------
    full = full_ref[...]                       # [5, HW]
    i0c_full = full[0:3, :]
    i0g_full = full[3:4, :]
    i1g_full = full[4:5, :]

    # TODO(synk): RAFT optical flow is an external checkpoint-loaded submodule;
    # replaced by a deterministic linear (1x1-conv) flow head of identical I/O.
    fb0 = a_cur0 * i0g_full + a_prev0 * i1g_full      # bwd flow x  [1, HW]
    fb1 = a_cur1 * i0g_full + a_prev1 * i1g_full      # bwd flow y  [1, HW]

    # stacked gather LHS [i0c ; flow_bwd] pushed through the MXU once per corner
    src = jnp.concatenate([i0c_full, fb0, fb1], axis=0).astype(bf16)   # [5, HW]

    # ---- per-output-tile quantities ------------------------------------------
    cur = cur_ref[...]                          # [3, T]
    i1L_t = cur[0:1, :]
    i1g_t = cur[1:2, :]
    i0g_t = cur[2:3, :]

    ff0 = a_cur0 * i1g_t + a_prev0 * i0g_t      # fwd flow x  [1, T]
    ff1 = a_cur1 * i1g_t + a_prev1 * i0g_t      # fwd flow y  [1, T]

    pidx = jax.lax.broadcasted_iota(jnp.int32, (1, TILE), 1) + t * TILE
    pflat = pidx.astype(f32)
    py = jnp.floor(pflat / float(Wimg))
    px = pflat - py * float(Wimg)

    xs = px + ff0
    ys = py + ff1
    x0f = jnp.floor(xs)
    y0f = jnp.floor(ys)
    wx1 = xs - x0f
    wx0 = 1.0 - wx1
    wy1 = ys - y0f
    wy0 = 1.0 - wy1
    x0 = x0f.astype(jnp.int32)
    y0 = y0f.astype(jnp.int32)
    x1 = x0 + 1
    y1 = y0 + 1

    # source-pixel iota, hoisted out of the per-corner code: [HW, T]
    qiota = jax.lax.broadcasted_iota(jnp.int32, (HW, TILE), 0)

    def corner(xi, yi, w, gathered, valid_w):
        inb = (xi >= 0) & (xi < Wimg) & (yi >= 0) & (yi < Himg)
        xi_c = jnp.clip(xi, 0, Wimg - 1)
        yi_c = jnp.clip(yi, 0, Himg - 1)
        qidx = yi_c * Wimg + xi_c                               # [1, T]
        # UNWEIGHTED one-hot gather (gather-then-weight): only compare + cast
        # per [HW, T] element; bilinear weight is applied to the [5, T] result.
        onehot = (qiota == qidx).astype(f32).astype(bf16)       # [HW, T]
        g = jnp.dot(src, onehot, preferred_element_type=f32)    # [5, T]
        wgt = jnp.where(inb, w, 0.0)                            # [1, T]
        return gathered + g * wgt, valid_w + wgt

    gathered = jnp.zeros((5, TILE), f32)
    valid_w = jnp.zeros((1, TILE), f32)
    gathered, valid_w = corner(x0, y0, wx0 * wy0, gathered, valid_w)
    gathered, valid_w = corner(x1, y0, wx1 * wy0, gathered, valid_w)
    gathered, valid_w = corner(x0, y1, wx0 * wy1, gathered, valid_w)
    gathered, valid_w = corner(x1, y1, wx1 * wy1, gathered, valid_w)

    # flow_warp_with_mask's valid_ooim: in-image bilinear weight coverage.
    valid = (valid_w > 0.999).astype(f32)
    i0cw = 0.5 + (gathered[0:3, :] - 0.5) * valid               # [3, T]
    fbw0 = gathered[3:4, :]                                     # warped bwd flow
    fbw1 = gathered[4:5, :]

    # ---- est_occl_heu: fwd/bwd consistency heuristic --------------------------
    fd0 = ff0 + fbw0
    fd1 = ff1 + fbw1
    mag_d = fd0 * fd0 + fd1 * fd1
    mag_f = ff0 * ff0 + ff1 * ff1
    mag_b = fbw0 * fbw0 + fbw1 * fbw1
    occl = (mag_d > occl_a1 * (mag_f + mag_b) + occl_a2).astype(f32)
    matched = 1.0 - occl                        # matched10_hard
    fdelta = jnp.sqrt(mag_d)                    # torch.norm(p=2, dim=1, keepdim)

    # ---- simulate file quantizations ------------------------------------------
    fdelta_q = jnp.clip(256.0 * fdelta, 0.0, 65535.0) / 256.0
    matched_q = jnp.clip(255.0 * matched, 0.0, 255.0) / 255.0

    # TODO(synk): flow2uint16restoresim is not provided; KITTI-style uint16
    # quantization (scale 64, offset 2^15) is used as the restore simulation.
    def quant_flow(f):
        return (jnp.floor(jnp.clip(f * 64.0 + 32768.0, 0.0, 65535.0) + 0.5)
                - 32768.0) / 64.0

    flow_q0 = quant_flow(ff0)
    flow_q1 = quant_flow(ff1)

    # ---- fuse-and-refine -------------------------------------------------------
    # TODO(synk): _fuse_and_refine (VideoRecolourer) is an external checkpoint-
    # loaded submodule; replaced by a deterministic 1x1-conv fusion implemented
    # as VPU scalar-broadcast multiply-adds (no tiny-K MXU matmuls).
    feats = (i1L_t, i0cw[0:1, :], i0cw[1:2, :], i0cw[2:3, :], matched_q, fdelta_q)
    resid = []
    for c in range(3):
        acc = wfuse_ref[c, 0] * feats[0]
        for k in range(1, 6):
            acc = acc + wfuse_ref[c, k] * feats[k]
        resid.append(0.1 * jnp.tanh(acc))

    xcol0 = i1L_t + resid[0]
    xcol1 = 0.5 + (i0cw[1:2, :] - 0.5) * matched_q + resid[1]
    xcol2 = 0.5 + (i0cw[2:3, :] - 0.5) * matched_q + resid[2]

    # single dense [16, T] slab store: unmasked vst, one output DMA per tile.
    out_ref[...] = jnp.concatenate(
        [xcol0, xcol1, xcol2, i0cw, flow_q0, flow_q1, fdelta_q, matched_q,
         jnp.zeros((6, TILE), f32)], axis=0)


def _pick_tile(hw):
    """Largest 128-multiple output tile dividing HW whose [HW, TILE] transients
    stay well under the default scoped-VMEM limits (v5e/v6e/v7x safe)."""
    if hw % 128 != 0:
        return hw                                  # tiny / odd sizes: single tile
    budget = 8 * 1024 * 1024                       # ~8 B/elem of [HW, TILE] transients
    for cand in (1024, 512, 256, 128):
        if hw % cand == 0 and hw * cand * 8 <= budget:
            return cand
    # TODO(synk): for very large HW the gather-as-matmul is O(HW^2); switch to a
    # true DMA/row gather of i0c/flow_bwd for realistic resolutions.
    return 128


def lvvcp_combined_inference(data, w_flow, w_fuse, *, occl_a1=0.01, occl_a2=0.5):
    """Forward pass (inference, data_prev=None, flow candidates only)."""
    i0c, i0g3, i1L, i1g3 = data['i0c'], data['i0g3'], data['i1L'], data['i1g3']
    N, _, H, W = i0c.shape
    assert N == 1, "inference path assumes N=1 (RAFT fwd/bwd stacking)"
    HW = H * W
    TILE = _pick_tile(HW)
    n_tiles = HW // TILE

    def flat(x):
        return x.reshape(x.shape[1], HW).astype(jnp.float32)

    # gray inputs are 3x-duplicated: keep a single channel and fold the channel
    # sum of the flow-head weights into effective [2, 2] weights (exact).
    i0c_f = flat(i0c)
    i0g = flat(i0g3)[0:1, :]
    i1g = flat(i1g3)[0:1, :]
    i1L_f = flat(i1L)[0:1, :]

    w_flow = w_flow.astype(jnp.float32)
    w_fuse = w_fuse.astype(jnp.float32)
    w_eff = jnp.stack([jnp.sum(w_flow[:, 0:3], axis=1),
                       jnp.sum(w_flow[:, 3:6], axis=1)], axis=1)    # [2, 2]

    full_slab = jnp.concatenate([i0c_f, i0g, i1g], axis=0)          # [5, HW]
    cur_slab = jnp.concatenate([i1L_f, i1g, i0g], axis=0)           # [3, HW]

    kernel = functools.partial(_lvvcp_kernel, Himg=H, Wimg=W, TILE=TILE,
                               occl_a1=occl_a1, occl_a2=occl_a2)

    cost = pl.CostEstimate(
        flops=40 * HW * HW + 64 * HW,           # 4 corner dots of [5,HW]x[HW,T]
        transcendentals=4 * HW,                 # 3x tanh + 1x sqrt per pixel
        bytes_accessed=4 * (5 * HW + 3 * HW + 16 * HW) + 4 * (4 + 18),
    )

    out = pl.pallas_call(
        kernel,
        out_shape=jax.ShapeDtypeStruct((16, HW), jnp.float32),
        grid_spec=pltpu.PrefetchScalarGridSpec(
            num_scalar_prefetch=2,
            grid=(n_tiles,),
            in_specs=[
                pl.BlockSpec((5, HW), lambda t, wf, wz: (0, 0)),    # full src slab
                pl.BlockSpec((3, TILE), lambda t, wf, wz: (0, t)),  # per-tile cur
            ],
            out_specs=pl.BlockSpec((16, TILE), lambda t, wf, wz: (0, t)),
        ),
        compiler_params=pltpu.CompilerParams(
            dimension_semantics=("parallel",),
            vmem_limit_bytes=32 * 1024 * 1024,
        ),
        cost_estimate=cost,
    )(w_eff, w_fuse, full_slab, cur_slab)

    def unflat(x):
        return x.reshape(1, x.shape[0], H, W)

    x_col = unflat(out[0:3])
    res = {
        'i0cw': unflat(out[3:6]),
        'flow10': unflat(out[6:8]),
        'fdelta10': unflat(out[8:9]),
        'matched10_hard': unflat(out[9:10]),
        'matched10_soft': unflat(out[9:10]),
    }
    # TODO(synk): propagate_old_masks / local & global FeatureMatcher candidate
    # branches are external submodules and disabled in this config (flow only).
    return x_col, res


if __name__ == "__main__":
    key = jax.random.PRNGKey(0)
    k1, k2, k3, k4, k5 = jax.random.split(key, 5)
    N, H, W = 1, 16, 16

    i0c = jax.random.uniform(k1, (N, 3, H, W), jnp.float32)   # prev colour (Lab in [0,1])
    i0g = jax.random.uniform(k2, (N, 1, H, W), jnp.float32)
    i1L = jax.random.uniform(k3, (N, 1, H, W), jnp.float32)
    data = {
        'i0c': i0c,
        'i0g3': jnp.tile(i0g, (1, 3, 1, 1)),
        'i1L': i1L,
        'i1g3': jnp.tile(i1L, (1, 3, 1, 1)),
    }

    # Deterministic stand-in parameters (see TODO(synk) comments in the kernel).
    w_flow = 0.5 * jax.random.normal(k4, (2, 6), jnp.float32)
    w_fuse = 0.1 * jax.random.normal(k5, (3, 6), jnp.float32)

    x_colorized, res = lvvcp_combined_inference(data, w_flow, w_fuse)
    jax.block_until_ready((x_colorized, res))

    assert x_colorized.shape == (1, 3, H, W)
    assert res['i0cw'].shape == (1, 3, H, W)
    assert res['flow10'].shape == (1, 2, H, W)
    assert res['fdelta10'].shape == (1, 1, H, W)
    assert res['matched10_hard'].shape == (1, 1, H, W)
    assert res['matched10_soft'].shape == (1, 1, H, W)
    print("KERNEL_OK")
</pallas_src>

<mosaic_0001>
module attributes {stable_mosaic.version = 11 : i64} {
  func.func @_lvvcp_kernel(%arg0: i32, %arg1: memref<2x2xf32, #tpu.memory_space<smem>>, %arg2: memref<3x6xf32, #tpu.memory_space<smem>>, %arg3: memref<5x256xf32, #tpu.memory_space<vmem>>, %arg4: memref<3x256xf32, #tpu.memory_space<vmem>>, %arg5: memref<16x256xf32, #tpu.memory_space<vmem>>) attributes {dimension_semantics = [#tpu.dimension_semantics<parallel>], iteration_bounds = array<i64: 1>, scalar_prefetch = 2 : i64, scratch_operands = 0 : i64, tpu.core_type = #tpu.core_type<tc>, window_params = [{pipeline_mode = #tpu.pipeline_mode<synchronous>, transform_indices = @transform_0, window_bounds = array<i64: 5, 256>}, {transform_indices = @transform_1, window_bounds = array<i64: 3, 256>}, {transform_indices = @transform_2, window_bounds = array<i64: 16, 256>}]} {
    %c0 = arith.constant 0 : index
    %c0_0 = arith.constant 0 : index
    %0 = memref.load %arg1[%c0, %c0_0] : memref<2x2xf32, #tpu.memory_space<smem>>
    %c0_1 = arith.constant 0 : index
    %c1 = arith.constant 1 : index
    %1 = memref.load %arg1[%c0_1, %c1] : memref<2x2xf32, #tpu.memory_space<smem>>
    %c1_2 = arith.constant 1 : index
    %c0_3 = arith.constant 0 : index
    %2 = memref.load %arg1[%c1_2, %c0_3] : memref<2x2xf32, #tpu.memory_space<smem>>
    %c1_4 = arith.constant 1 : index
    %c1_5 = arith.constant 1 : index
    %3 = memref.load %arg1[%c1_4, %c1_5] : memref<2x2xf32, #tpu.memory_space<smem>>
    %c0_6 = arith.constant 0 : index
    %c0_7 = arith.constant 0 : index
    %4 = vector.load %arg3[%c0_6, %c0_7] : memref<5x256xf32, #tpu.memory_space<vmem>>, vector<5x256xf32>
    %5 = vector.extract_strided_slice %4 {offsets = [0, 0], sizes = [3, 256], strides = [1, 1]} : vector<5x256xf32> to vector<3x256xf32>
    %6 = vector.extract_strided_slice %4 {offsets = [3, 0], sizes = [1, 256], strides = [1, 1]} : vector<5x256xf32> to vector<1x256xf32>
    %7 = vector.extract_strided_slice %4 {offsets = [4, 0], sizes = [1, 256], strides = [1, 1]} : vector<5x256xf32> to vector<1x256xf32>
    %8 = vector.broadcast %0 : f32 to vector<1x256xf32>
    %9 = arith.mulf %8, %6 : vector<1x256xf32>
    %10 = vector.broadcast %1 : f32 to vector<1x256xf32>
    %11 = arith.mulf %10, %7 : vector<1x256xf32>
    %12 = arith.addf %9, %11 : vector<1x256xf32>
    %13 = vector.broadcast %2 : f32 to vector<1x256xf32>
    %14 = arith.mulf %13, %6 : vector<1x256xf32>
    %15 = vector.broadcast %3 : f32 to vector<1x256xf32>
    %16 = arith.mulf %15, %7 : vector<1x256xf32>
    %17 = arith.addf %14, %16 : vector<1x256xf32>
    %18 = tpu.concatenate %5, %12, %17 in 0 : vector<3x256xf32>, vector<1x256xf32>, vector<1x256xf32> -> vector<5x256xf32>
    %19 = arith.truncf %18 : vector<5x256xf32> to vector<5x256xbf16>
    %c0_8 = arith.constant 0 : index
    %c0_9 = arith.constant 0 : index
    %20 = vector.load %arg4[%c0_8, %c0_9] : memref<3x256xf32, #tpu.memory_space<vmem>>, vector<3x256xf32>
    %21 = vector.extract_strided_slice %20 {offsets = [0, 0], sizes = [1, 256], strides = [1, 1]} : vector<3x256xf32> to vector<1x256xf32>
    %22 = vector.extract_strided_slice %20 {offsets = [1, 0], sizes = [1, 256], strides = [1, 1]} : vector<3x256xf32> to vector<1x256xf32>
    %23 = vector.extract_strided_slice %20 {offsets = [2, 0], sizes = [1, 256], strides = [1, 1]} : vector<3x256xf32> to vector<1x256xf32>
    %24 = vector.broadcast %0 : f32 to vector<1x256xf32>
    %25 = arith.mulf %24, %22 : vector<1x256xf32>
    %26 = vector.broadcast %1 : f32 to vector<1x256xf32>
    %27 = arith.mulf %26, %23 : vector<1x256xf32>
    %28 = arith.addf %25, %27 : vector<1x256xf32>
    %29 = vector.broadcast %2 : f32 to vector<1x256xf32>
    %30 = arith.mulf %29, %22 : vector<1x256xf32>
    %31 = vector.broadcast %3 : f32 to vector<1x256xf32>
    %32 = arith.mulf %31, %23 : vector<1x256xf32>
    %33 = arith.addf %30, %32 : vector<1x256xf32>
    %34 = tpu.iota {dimensions = array<i32: 1>} : vector<1x256xi32>
    %c256_i32 = arith.constant 256 : i32
    %35 = arith.muli %arg0, %c256_i32 : i32
    %36 = vector.broadcast %35 : i32 to vector<1x256xi32>
    %37 = arith.addi %34, %36 : vector<1x256xi32>
    %38 = arith.sitofp %37 : vector<1x256xi32> to vector<1x256xf32>
    %cst = arith.constant 1.600000e+01 : f32
    %39 = vector.broadcast %cst : f32 to vector<1x256xf32>
    %40 = arith.divf %38, %39 : vector<1x256xf32>
    %41 = math.floor %40 : vector<1x256xf32>
    %cst_10 = arith.constant 1.600000e+01 : f32
    %42 = vector.broadcast %cst_10 : f32 to vector<1x256xf32>
    %43 = arith.mulf %41, %42 : vector<1x256xf32>
    %44 = arith.subf %38, %43 : vector<1x256xf32>
    %45 = arith.addf %44, %28 : vector<1x256xf32>
    %46 = arith.addf %41, %33 : vector<1x256xf32>
    %47 = math.floor %45 : vector<1x256xf32>
    %48 = math.floor %46 : vector<1x256xf32>
    %49 = arith.subf %45, %47 : vector<1x256xf32>
    %cst_11 = arith.constant 1.000000e+00 : f32
    %50 = vector.broadcast %cst_11 : f32 to vector<1x256xf32>
    %51 = arith.subf %50, %49 : vector<1x256xf32>
    %52 = arith.subf %46, %48 : vector<1x256xf32>
    %cst_12 = arith.constant 1.000000e+00 : f32
    %53 = vector.broadcast %cst_12 : f32 to vector<1x256xf32>
    %54 = arith.subf %53, %52 : vector<1x256xf32>
    %55 = arith.fptosi %47 : vector<1x256xf32> to vector<1x256xi32>
    %56 = arith.fptosi %48 : vector<1x256xf32> to vector<1x256xi32>
    %c1_i32 = arith.constant 1 : i32
    %57 = vector.broadcast %c1_i32 : i32 to vector<1x256xi32>
    %58 = arith.addi %55, %57 : vector<1x256xi32>
    %c1_i32_13 = arith.constant 1 : i32
    %59 = vector.broadcast %c1_i32_13 : i32 to vector<1x256xi32>
    %60 = arith.addi %56, %59 : vector<1x256xi32>
    %61 = tpu.iota {dimensions = array<i32: 0>} : vector<256x256xi32>
    %cst_14 = arith.constant 0.000000e+00 : f32
    %62 = vector.broadcast %cst_14 : f32 to vector<5x256xf32>
    %cst_15 = arith.constant 0.000000e+00 : f32
    %63 = vector.broadcast %cst_15 : f32 to vector<1x256xf32>
    %64 = arith.mulf %51, %54 : vector<1x256xf32>
    %c0_i32 = arith.constant 0 : i32
    %65 = vector.broadcast %c0_i32 : i32 to vector<1x256xi32>
    %66 = arith.cmpi sge, %55, %65 : vector<1x256xi32>
    %c16_i32 = arith.constant 16 : i32
    %67 = vector.broadcast %c16_i32 : i32 to vector<1x256xi32>
    %68 = arith.cmpi slt, %55, %67 : vector<1x256xi32>
    %69 = arith.andi %66, %68 : vector<1x256xi1>
    %c0_i32_16 = arith.constant 0 : i32
    %70 = vector.broadcast %c0_i32_16 : i32 to vector<1x256xi32>
    %71 = arith.cmpi sge, %56, %70 : vector<1x256xi32>
    %72 = arith.andi %69, %71 : vector<1x256xi1>
    %c16_i32_17 = arith.constant 16 : i32
    %73 = vector.broadcast %c16_i32_17 : i32 to vector<1x256xi32>
    %74 = arith.cmpi slt, %56, %73 : vector<1x256xi32>
    %75 = arith.andi %72, %74 : vector<1x256xi1>
    %c0_i32_18 = arith.constant 0 : i32
    %c15_i32 = arith.constant 15 : i32
    %76 = vector.broadcast %c0_i32_18 : i32 to vector<1x256xi32>
    %77 = arith.maxsi %76, %55 : vector<1x256xi32>
    %78 = vector.broadcast %c15_i32 : i32 to vector<1x256xi32>
    %79 = arith.minsi %78, %77 : vector<1x256xi32>
    %c0_i32_19 = arith.constant 0 : i32
    %c15_i32_20 = arith.constant 15 : i32
    %80 = vector.broadcast %c0_i32_19 : i32 to vector<1x256xi32>
    %81 = arith.maxsi %80, %56 : vector<1x256xi32>
    %82 = vector.broadcast %c15_i32_20 : i32 to vector<1x256xi32>
    %83 = arith.minsi %82, %81 : vector<1x256xi32>
    %c16_i32_21 = arith.constant 16 : i32
    %84 = vector.broadcast %c16_i32_21 : i32 to vector<1x256xi32>
    %85 = arith.muli %83, %84 : vector<1x256xi32>
    %86 = arith.addi %85, %79 : vector<1x256xi32>
    %87 = vector.broadcast %86 : vector<1x256xi32> to vector<256x256xi32>
    %88 = arith.cmpi eq, %61, %87 : vector<256x256xi32>
    %89 = arith.extui %88 : vector<256x256xi1> to vector<256x256xi32>
    %90 = arith.sitofp %89 : vector<256x256xi32> to vector<256x256xf32>
    %91 = arith.truncf %90 : vector<256x256xf32> to vector<256x256xbf16>
    %cst_22 = arith.constant dense<0.000000e+00> : vector<5x256xf32>
    %92 = tpu.matmul %19, %91, %cst_22 {dimension_numbers = #tpu.dot_dimension_numbers<[1], [0], [0], [1], [0, 0, 1, 1], [], []>} : vector<5x256xbf16>, vector<256x256xbf16>, vector<5x256xf32> -> vector<5x256xf32>
    %cst_23 = arith.constant 0.000000e+00 : f32
    %93 = vector.broadcast %cst_23 : f32 to vector<1x256xf32>
    %94 = arith.select %75, %64, %93 : vector<1x256xi1>, vector<1x256xf32>
    %95 = vector.broadcast %94 : vector<1x256xf32> to vector<5x256xf32>
    %96 = arith.mulf %92, %95 : vector<5x256xf32>
    %97 = arith.addf %62, %96 : vector<5x256xf32>
    %98 = arith.addf %63, %94 : vector<1x256xf32>
    %99 = arith.mulf %49, %54 : vector<1x256xf32>
    %c0_i32_24 = arith.constant 0 : i32
    %100 = vector.broadcast %c0_i32_24 : i32 to vector<1x256xi32>
    %101 = arith.cmpi sge, %58, %100 : vector<1x256xi32>
    %c16_i32_25 = arith.constant 16 : i32
    %102 = vector.broadcast %c16_i32_25 : i32 to vector<1x256xi32>
    %103 = arith.cmpi slt, %58, %102 : vector<1x256xi32>
    %104 = arith.andi %101, %103 : vector<1x256xi1>
    %c0_i32_26 = arith.constant 0 : i32
    %105 = vector.broadcast %c0_i32_26 : i32 to vector<1x256xi32>
    %106 = arith.cmpi sge, %56, %105 : vector<1x256xi32>
    %107 = arith.andi %104, %106 : vector<1x256xi1>
    %c16_i32_27 = arith.constant 16 : i32
    %108 = vector.broadcast %c16_i32_27 : i32 to vector<1x256xi32>
    %109 = arith.cmpi slt, %56, %108 : vector<1x256xi32>
    %110 = arith.andi %107, %109 : vector<1x256xi1>
    %c0_i32_28 = arith.constant 0 : i32
    %c15_i32_29 = arith.constant 15 : i32
    %111 = vector.broadcast %c0_i32_28 : i32 to vector<1x256xi32>
    %112 = arith.maxsi %111, %58 : vector<1x256xi32>
    %113 = vector.broadcast %c15_i32_29 : i32 to vector<1x256xi32>
    %114 = arith.minsi %113, %112 : vector<1x256xi32>
    %c0_i32_30 = arith.constant 0 : i32
    %c15_i32_31 = arith.constant 15 : i32
    %115 = vector.broadcast %c0_i32_30 : i32 to vector<1x256xi32>
    %116 = arith.maxsi %115, %56 : vector<1x256xi32>
    %117 = vector.broadcast %c15_i32_31 : i32 to vector<1x256xi32>
    %118 = arith.minsi %117, %116 : vector<1x256xi32>
    %c16_i32_32 = arith.constant 16 : i32
    %119 = vector.broadcast %c16_i32_32 : i32 to vector<1x256xi32>
    %120 = arith.muli %118, %119 : vector<1x256xi32>
    %121 = arith.addi %120, %114 : vector<1x256xi32>
    %122 = vector.broadcast %121 : vector<1x256xi32> to vector<256x256xi32>
    %123 = arith.cmpi eq, %61, %122 : vector<256x256xi32>
    %124 = arith.extui %123 : vector<256x256xi1> to vector<256x256xi32>
    %125 = arith.sitofp %124 : vector<256x256xi32> to vector<256x256xf32>
    %126 = arith.truncf %125 : vector<256x256xf32> to vector<256x256xbf16>
    %cst_33 = arith.constant dense<0.000000e+00> : vector<5x256xf32>
    %127 = tpu.matmul %19, %126, %cst_33 {dimension_numbers = #tpu.dot_dimension_numbers<[1], [0], [0], [1], [0, 0, 1, 1], [], []>} : vector<5x256xbf16>, vector<256x256xbf16>, vector<5x256xf32> -> vector<5x256xf32>
    %cst_34 = arith.constant 0.000000e+00 : f32
    %128 = vector.broadcast %cst_34 : f32 to vector<1x256xf32>
    %129 = arith.select %110, %99, %128 : vector<1x256xi1>, vector<1x256xf32>
    %130 = vector.broadcast %129 : vector<1x256xf32> to vector<5x256xf32>
    %131 = arith.mulf %127, %130 : vector<5x256xf32>
    %132 = arith.addf %97, %131 : vector<5x256xf32>
    %133 = arith.addf %98, %129 : vector<1x256xf32>
    %134 = arith.mulf %51, %52 : vector<1x256xf32>
    %c0_i32_35 = arith.constant 0 : i32
    %135 = vector.broadcast %c0_i32_35 : i32 to vector<1x256xi32>
    %136 = arith.cmpi sge, %55, %135 : vector<1x256xi32>
    %c16_i32_36 = arith.constant 16 : i32
    %137 = vector.broadcast %c16_i32_36 : i32 to vector<1x256xi32>
    %138 = arith.cmpi slt, %55, %137 : vector<1x256xi32>
    %139 = arith.andi %136, %138 : vector<1x256xi1>
    %c0_i32_37 = arith.constant 0 : i32
    %140 = vector.broadcast %c0_i32_37 : i32 to vector<1x256xi32>
    %141 = arith.cmpi sge, %60, %140 : vector<1x256xi32>
    %142 = arith.andi %139, %141 : vector<1x256xi1>
    %c16_i32_38 = arith.constant 16 : i32
    %143 = vector.broadcast %c16_i32_38 : i32 to vector<1x256xi32>
    %144 = arith.cmpi slt, %60, %143 : vector<1x256xi32>
    %145 = arith.andi %142, %144 : vector<1x256xi1>
    %c0_i32_39 = arith.constant 0 : i32
    %c15_i32_40 = arith.constant 15 : i32
    %146 = vector.broadcast %c0_i32_39 : i32 to vector<1x256xi32>
    %147 = arith.maxsi %146, %55 : vector<1x256xi32>
    %148 = vector.broadcast %c15_i32_40 : i32 to vector<1x256xi32>
    %149 = arith.minsi %148, %147 : vector<1x256xi32>
    %c0_i32_41 = arith.constant 0 : i32
    %c15_i32_42 = arith.constant 15 : i32
    %150 = vector.broadcast %c0_i32_41 : i32 to vector<1x256xi32>
    %151 = arith.maxsi %150, %60 : vector<1x256xi32>
    %152 = vector.broadcast %c15_i32_42 : i32 to vector<1x256xi32>
    %153 = arith.minsi %152, %151 : vector<1x256xi32>
    %c16_i32_43 = arith.constant 16 : i32
    %154 = vector.broadcast %c16_i32_43 : i32 to vector<1x256xi32>
    %155 = arith.muli %153, %154 : vector<1x256xi32>
    %156 = arith.addi %155, %149 : vector<1x256xi32>
    %157 = vector.broadcast %156 : vector<1x256xi32> to vector<256x256xi32>
    %158 = arith.cmpi eq, %61, %157 : vector<256x256xi32>
    %159 = arith.extui %158 : vector<256x256xi1> to vector<256x256xi32>
    %160 = arith.sitofp %159 : vector<256x256xi32> to vector<256x256xf32>
    %161 = arith.truncf %160 : vector<256x256xf32> to vector<256x256xbf16>
    %cst_44 = arith.constant dense<0.000000e+00> : vector<5x256xf32>
    %162 = tpu.matmul %19, %161, %cst_44 {dimension_numbers = #tpu.dot_dimension_numbers<[1], [0], [0], [1], [0, 0, 1, 1], [], []>} : vector<5x256xbf16>, vector<256x256xbf16>, vector<5x256xf32> -> vector<5x256xf32>
    %cst_45 = arith.constant 0.000000e+00 : f32
    %163 = vector.broadcast %cst_45 : f32 to vector<1x256xf32>
    %164 = arith.select %145, %134, %163 : vector<1x256xi1>, vector<1x256xf32>
    %165 = vector.broadcast %164 : vector<1x256xf32> to vector<5x256xf32>
    %166 = arith.mulf %162, %165 : vector<5x256xf32>
    %167 = arith.addf %132, %166 : vector<5x256xf32>
    %168 = arith.addf %133, %164 : vector<1x256xf32>
    %169 = arith.mulf %49, %52 : vector<1x256xf32>
    %c0_i32_46 = arith.constant 0 : i32
    %170 = vector.broadcast %c0_i32_46 : i32 to vector<1x256xi32>
    %171 = arith.cmpi sge, %58, %170 : vector<1x256xi32>
    %c16_i32_47 = arith.constant 16 : i32
    %172 = vector.broadcast %c16_i32_47 : i32 to vector<1x256xi32>
    %173 = arith.cmpi slt, %58, %172 : vector<1x256xi32>
    %174 = arith.andi %171, %173 : vector<1x256xi1>
    %c0_i32_48 = arith.constant 0 : i32
    %175 = vector.broadcast %c0_i32_48 : i32 to vector<1x256xi32>
    %176 = arith.cmpi sge, %60, %175 : vector<1x256xi32>
    %177 = arith.andi %174, %176 : vector<1x256xi1>
    %c16_i32_49 = arith.constant 16 : i32
    %178 = vector.broadcast %c16_i32_49 : i32 to vector<1x256xi32>
    %179 = arith.cmpi slt, %60, %178 : vector<1x256xi32>
    %180 = arith.andi %177, %179 : vector<1x256xi1>
    %c0_i32_50 = arith.constant 0 : i32
    %c15_i32_51 = arith.constant 15 : i32
    %181 = vector.broadcast %c0_i32_50 : i32 to vector<1x256xi32>
    %182 = arith.maxsi %181, %58 : vector<1x256xi32>
    %183 = vector.broadcast %c15_i32_51 : i32 to vector<1x256xi32>
    %184 = arith.minsi %183, %182 : vector<1x256xi32>
    %c0_i32_52 = arith.constant 0 : i32
    %c15_i32_53 = arith.constant 15 : i32
    %185 = vector.broadcast %c0_i32_52 : i32 to vector<1x256xi32>
    %186 = arith.maxsi %185, %60 : vector<1x256xi32>
    %187 = vector.broadcast %c15_i32_53 : i32 to vector<1x256xi32>
    %188 = arith.minsi %187, %186 : vector<1x256xi32>
    %c16_i32_54 = arith.constant 16 : i32
    %189 = vector.broadcast %c16_i32_54 : i32 to vector<1x256xi32>
    %190 = arith.muli %188, %189 : vector<1x256xi32>
    %191 = arith.addi %190, %184 : vector<1x256xi32>
    %192 = vector.broadcast %191 : vector<1x256xi32> to vector<256x256xi32>
    %193 = arith.cmpi eq, %61, %192 : vector<256x256xi32>
    %194 = arith.extui %193 : vector<256x256xi1> to vector<256x256xi32>
    %195 = arith.sitofp %194 : vector<256x256xi32> to vector<256x256xf32>
    %196 = arith.truncf %195 : vector<256x256xf32> to vector<256x256xbf16>
    %cst_55 = arith.constant dense<0.000000e+00> : vector<5x256xf32>
    %197 = tpu.matmul %19, %196, %cst_55 {dimension_numbers = #tpu.dot_dimension_numbers<[1], [0], [0], [1], [0, 0, 1, 1], [], []>} : vector<5x256xbf16>, vector<256x256xbf16>, vector<5x256xf32> -> vector<5x256xf32>
    %cst_56 = arith.constant 0.000000e+00 : f32
    %198 = vector.broadcast %cst_56 : f32 to vector<1x256xf32>
    %199 = arith.select %180, %169, %198 : vector<1x256xi1>, vector<1x256xf32>
    %200 = vector.broadcast %199 : vector<1x256xf32> to vector<5x256xf32>
    %201 = arith.mulf %197, %200 : vector<5x256xf32>
    %202 = arith.addf %167, %201 : vector<5x256xf32>
    %203 = arith.addf %168, %199 : vector<1x256xf32>
    %cst_57 = arith.constant 9.990000e-01 : f32
    %204 = vector.broadcast %cst_57 : f32 to vector<1x256xf32>
    %205 = arith.cmpf ogt, %203, %204 : vector<1x256xf32>
    %206 = arith.extui %205 : vector<1x256xi1> to vector<1x256xi32>
    %207 = arith.sitofp %206 : vector<1x256xi32> to vector<1x256xf32>
    %208 = vector.extract_strided_slice %202 {offsets = [0, 0], sizes = [3, 256], strides = [1, 1]} : vector<5x256xf32> to vector<3x256xf32>
    %cst_58 = arith.constant 5.000000e-01 : f32
    %209 = vector.broadcast %cst_58 : f32 to vector<3x256xf32>
    %210 = arith.subf %208, %209 : vector<3x256xf32>
    %211 = vector.broadcast %207 : vector<1x256xf32> to vector<3x256xf32>
    %212 = arith.mulf %210, %211 : vector<3x256xf32>
    %cst_59 = arith.constant 5.000000e-01 : f32
    %213 = vector.broadcast %cst_59 : f32 to vector<3x256xf32>
    %214 = arith.addf %213, %212 : vector<3x256xf32>
    %215 = vector.extract_strided_slice %202 {offsets = [3, 0], sizes = [1, 256], strides = [1, 1]} : vector<5x256xf32> to vector<1x256xf32>
    %216 = vector.extract_strided_slice %202 {offsets = [4, 0], sizes = [1, 256], strides = [1, 1]} : vector<5x256xf32> to vector<1x256xf32>
    %217 = arith.addf %28, %215 : vector<1x256xf32>
    %218 = arith.addf %33, %216 : vector<1x256xf32>
    %219 = arith.mulf %217, %217 : vector<1x256xf32>
    %220 = arith.mulf %218, %218 : vector<1x256xf32>
    %221 = arith.addf %219, %220 : vector<1x256xf32>
    %222 = arith.mulf %28, %28 : vector<1x256xf32>
    %223 = arith.mulf %33, %33 : vector<1x256xf32>
    %224 = arith.addf %222, %223 : vector<1x256xf32>
    %225 = arith.mulf %215, %215 : vector<1x256xf32>
    %226 = arith.mulf %216, %216 : vector<1x256xf32>
    %227 = arith.addf %225, %226 : vector<1x256xf32>
    %228 = arith.addf %224, %227 : vector<1x256xf32>
    %cst_60 = arith.constant 0.00999999977 : f32
    %229 = vector.broadcast %cst_60 : f32 to vector<1x256xf32>
    %230 = arith.mulf %229, %228 : vector<1x256xf32>
    %cst_61 = arith.constant 5.000000e-01 : f32
    %231 = vector.broadcast %cst_61 : f32 to vector<1x256xf32>
    %232 = arith.addf %230, %231 : vector<1x256xf32>
    %233 = arith.cmpf ogt, %221, %232 : vector<1x256xf32>
    %234 = arith.extui %233 : vector<1x256xi1> to vector<1x256xi32>
    %235 = arith.sitofp %234 : vector<1x256xi32> to vector<1x256xf32>
    %cst_62 = arith.constant 1.000000e+00 : f32
    %236 = vector.broadcast %cst_62 : f32 to vector<1x256xf32>
    %237 = arith.subf %236, %235 : vector<1x256xf32>
    %238 = math.sqrt %221 : vector<1x256xf32>
    %cst_63 = arith.constant 2.560000e+02 : f32
    %239 = vector.broadcast %cst_63 : f32 to vector<1x256xf32>
    %240 = arith.mulf %239, %238 : vector<1x256xf32>
    %cst_64 = arith.constant 0.000000e+00 : f32
    %cst_65 = arith.constant 6.553500e+04 : f32
    %241 = vector.broadcast %cst_64 : f32 to vector<1x256xf32>
    %242 = arith.maximumf %241, %240 : vector<1x256xf32>
    %243 = vector.broadcast %cst_65 : f32 to vector<1x256xf32>
    %244 = arith.minimumf %243, %242 : vector<1x256xf32>
    %cst_66 = arith.constant 2.560000e+02 : f32
    %245 = vector.broadcast %cst_66 : f32 to vector<1x256xf32>
    %246 = arith.divf %244, %245 : vector<1x256xf32>
    %cst_67 = arith.constant 2.550000e+02 : f32
    %247 = vector.broadcast %cst_67 : f32 to vector<1x256xf32>
    %248 = arith.mulf %247, %237 : vector<1x256xf32>
    %cst_68 = arith.constant 0.000000e+00 : f32
    %cst_69 = arith.constant 2.550000e+02 : f32
    %249 = vector.broadcast %cst_68 : f32 to vector<1x256xf32>
    %250 = arith.maximumf %249, %248 : vector<1x256xf32>
    %251 = vector.broadcast %cst_69 : f32 to vector<1x256xf32>
    %252 = arith.minimumf %251, %250 : vector<1x256xf32>
    %cst_70 = arith.constant 2.550000e+02 : f32
    %253 = vector.broadcast %cst_70 : f32 to vector<1x256xf32>
    %254 = arith.divf %252, %253 : vector<1x256xf32>
    %cst_71 = arith.constant 6.400000e+01 : f32
    %255 = vector.broadcast %cst_71 : f32 to vector<1x256xf32>
    %256 = arith.mulf %28, %255 : vector<1x256xf32>
    %cst_72 = arith.constant 3.276800e+04 : f32
    %257 = vector.broadcast %cst_72 : f32 to vector<1x256xf32>
    %258 = arith.addf %256, %257 : vector<1x256xf32>
    %cst_73 = arith.constant 0.000000e+00 : f32
    %cst_74 = arith.constant 6.553500e+04 : f32
    %259 = vector.broadcast %cst_73 : f32 to vector<1x256xf32>
    %260 = arith.maximumf %259, %258 : vector<1x256xf32>
    %261 = vector.broadcast %cst_74 : f32 to vector<1x256xf32>
    %262 = arith.minimumf %261, %260 : vector<1x256xf32>
    %cst_75 = arith.constant 5.000000e-01 : f32
    %263 = vector.broadcast %cst_75 : f32 to vector<1x256xf32>
    %264 = arith.addf %262, %263 : vector<1x256xf32>
    %265 = math.floor %264 : vector<1x256xf32>
    %cst_76 = arith.constant 3.276800e+04 : f32
    %266 = vector.broadcast %cst_76 : f32 to vector<1x256xf32>
    %267 = arith.subf %265, %266 : vector<1x256xf32>
    %cst_77 = arith.constant 6.400000e+01 : f32
    %268 = vector.broadcast %cst_77 : f32 to vector<1x256xf32>
    %269 = arith.divf %267, %268 : vector<1x256xf32>
    %cst_78 = arith.constant 6.400000e+01 : f32
    %270 = vector.broadcast %cst_78 : f32 to vector<1x256xf32>
    %271 = arith.mulf %33, %270 : vector<1x256xf32>
    %cst_79 = arith.constant 3.276800e+04 : f32
    %272 = vector.broadcast %cst_79 : f32 to vector<1x256xf32>
    %273 = arith.addf %271, %272 : vector<1x256xf32>
    %cst_80 = arith.constant 0.000000e+00 : f32
    %cst_81 = arith.constant 6.553500e+04 : f32
    %274 = vector.broadcast %cst_80 : f32 to vector<1x256xf32>
    %275 = arith.maximumf %274, %273 : vector<1x256xf32>
    %276 = vector.broadcast %cst_81 : f32 to vector<1x256xf32>
    %277 = arith.minimumf %276, %275 : vector<1x256xf32>
    %cst_82 = arith.constant 5.000000e-01 : f32
    %278 = vector.broadcast %cst_82 : f32 to vector<1x256xf32>
    %279 = arith.addf %277, %278 : vector<1x256xf32>
    %280 = math.floor %279 : vector<1x256xf32>
    %cst_83 = arith.constant 3.276800e+04 : f32
    %281 = vector.broadcast %cst_83 : f32 to vector<1x256xf32>
    %282 = arith.subf %280, %281 : vector<1x256xf32>
    %cst_84 = arith.constant 6.400000e+01 : f32
    %283 = vector.broadcast %cst_84 : f32 to vector<1x256xf32>
    %284 = arith.divf %282, %283 : vector<1x256xf32>
    %285 = vector.extract_strided_slice %214 {offsets = [0, 0], sizes = [1, 256], strides = [1, 1]} : vector<3x256xf32> to vector<1x256xf32>
    %286 = vector.extract_strided_slice %214 {offsets = [1, 0], sizes = [1, 256], strides = [1, 1]} : vector<3x256xf32> to vector<1x256xf32>
    %287 = vector.extract_strided_slice %214 {offsets = [2, 0], sizes = [1, 256], strides = [1, 1]} : vector<3x256xf32> to vector<1x256xf32>
    %c0_85 = arith.constant 0 : index
    %c0_86 = arith.constant 0 : index
    %288 = memref.load %arg2[%c0_85, %c0_86] : memref<3x6xf32, #tpu.memory_space<smem>>
    %289 = vector.broadcast %288 : f32 to vector<1x256xf32>
    %290 = arith.mulf %289, %21 : vector<1x256xf32>
    %c0_87 = arith.constant 0 : index
    %c1_88 = arith.constant 1 : index
    %291 = memref.load %arg2[%c0_87, %c1_88] : memref<3x6xf32, #tpu.memory_space<smem>>
    %292 = vector.broadcast %291 : f32 to vector<1x256xf32>
    %293 = arith.mulf %292, %285 : vector<1x256xf32>
    %294 = arith.addf %290, %293 : vector<1x256xf32>
    %c0_89 = arith.constant 0 : index
    %c2 = arith.constant 2 : index
    %295 = memref.load %arg2[%c0_89, %c2] : memref<3x6xf32, #tpu.memory_space<smem>>
    %296 = vector.broadcast %295 : f32 to vector<1x256xf32>
    %297 = arith.mulf %296, %286 : vector<1x256xf32>
    %298 = arith.addf %294, %297 : vector<1x256xf32>
    %c0_90 = arith.constant 0 : index
    %c3 = arith.constant 3 : index
    %299 = memref.load %arg2[%c0_90, %c3] : memref<3x6xf32, #tpu.memory_space<smem>>
    %300 = vector.broadcast %299 : f32 to vector<1x256xf32>
    %301 = arith.mulf %300, %287 : vector<1x256xf32>
    %302 = arith.addf %298, %301 : vector<1x256xf32>
    %c0_91 = arith.constant 0 : index
    %c4 = arith.constant 4 : index
    %303 = memref.load %arg2[%c0_91, %c4] : memref<3x6xf32, #tpu.memory_space<smem>>
    %304 = vector.broadcast %303 : f32 to vector<1x256xf32>
    %305 = arith.mulf %304, %254 : vector<1x256xf32>
    %306 = arith.addf %302, %305 : vector<1x256xf32>
    %c0_92 = arith.constant 0 : index
    %c5 = arith.constant 5 : index
    %307 = memref.load %arg2[%c0_92, %c5] : memref<3x6xf32, #tpu.memory_space<smem>>
    %308 = vector.broadcast %307 : f32 to vector<1x256xf32>
    %309 = arith.mulf %308, %246 : vector<1x256xf32>
    %310 = arith.addf %306, %309 : vector<1x256xf32>
    %311 = math.tanh %310 : vector<1x256xf32>
    %cst_93 = arith.constant 1.000000e-01 : f32
    %312 = vector.broadcast %cst_93 : f32 to vector<1x256xf32>
    %313 = arith.mulf %312, %311 : vector<1x256xf32>
    %c1_94 = arith.constant 1 : index
    %c0_95 = arith.constant 0 : index
    %314 = memref.load %arg2[%c1_94, %c0_95] : memref<3x6xf32, #tpu.memory_space<smem>>
    %315 = vector.broadcast %314 : f32 to vector<1x256xf32>
    %316 = arith.mulf %315, %21 : vector<1x256xf32>
    %c1_96 = arith.constant 1 : index
    %c1_97 = arith.constant 1 : index
    %317 = memref.load %arg2[%c1_96, %c1_97] : memref<3x6xf32, #tpu.memory_space<smem>>
    %318 = vector.broadcast %317 : f32 to vector<1x256xf32>
    %319 = arith.mulf %318, %285 : vector<1x256xf32>
    %320 = arith.addf %316, %319 : vector<1x256xf32>
    %c1_98 = arith.constant 1 : index
    %c2_99 = arith.constant 2 : index
    %321 = memref.load %arg2[%c1_98, %c2_99] : memref<3x6xf32, #tpu.memory_space<smem>>
    %322 = vector.broadcast %321 : f32 to vector<1x256xf32>
    %323 = arith.mulf %322, %286 : vector<1x256xf32>
    %324 = arith.addf %320, %323 : vector<1x256xf32>
    %c1_100 = arith.constant 1 : index
    %c3_101 = arith.constant 3 : index
    %325 = memref.load %arg2[%c1_100, %c3_101] : memref<3x6xf32, #tpu.memory_space<smem>>
    %326 = vector.broadcast %325 : f32 to vector<1x256xf32>
    %327 = arith.mulf %326, %287 : vector<1x256xf32>
    %328 = arith.addf %324, %327 : vector<1x256xf32>
    %c1_102 = arith.constant 1 : index
    %c4_103 = arith.constant 4 : index
    %329 = memref.load %arg2[%c1_102, %c4_103] : memref<3x6xf32, #tpu.memory_space<smem>>
    %330 = vector.broadcast %329 : f32 to vector<1x256xf32>
    %331 = arith.mulf %330, %254 : vector<1x256xf32>
    %332 = arith.addf %328, %331 : vector<1x256xf32>
    %c1_104 = arith.constant 1 : index
    %c5_105 = arith.constant 5 : index
    %333 = memref.load %arg2[%c1_104, %c5_105] : memref<3x6xf32, #tpu.memory_space<smem>>
    %334 = vector.broadcast %333 : f32 to vector<1x256xf32>
    %335 = arith.mulf %334, %246 : vector<1x256xf32>
    %336 = arith.addf %332, %335 : vector<1x256xf32>
    %337 = math.tanh %336 : vector<1x256xf32>
    %cst_106 = arith.constant 1.000000e-01 : f32
    %338 = vector.broadcast %cst_106 : f32 to vector<1x256xf32>
    %339 = arith.mulf %338, %337 : vector<1x256xf32>
    %c2_107 = arith.constant 2 : index
    %c0_108 = arith.constant 0 : index
    %340 = memref.load %arg2[%c2_107, %c0_108] : memref<3x6xf32, #tpu.memory_space<smem>>
    %341 = vector.broadcast %340 : f32 to vector<1x256xf32>
    %342 = arith.mulf %341, %21 : vector<1x256xf32>
    %c2_109 = arith.constant 2 : index
    %c1_110 = arith.constant 1 : index
    %343 = memref.load %arg2[%c2_109, %c1_110] : memref<3x6xf32, #tpu.memory_space<smem>>
    %344 = vector.broadcast %343 : f32 to vector<1x256xf32>
    %345 = arith.mulf %344, %285 : vector<1x256xf32>
    %346 = arith.addf %342, %345 : vector<1x256xf32>
    %c2_111 = arith.constant 2 : index
    %c2_112 = arith.constant 2 : index
    %347 = memref.load %arg2[%c2_111, %c2_112] : memref<3x6xf32, #tpu.memory_space<smem>>
    %348 = vector.broadcast %347 : f32 to vector<1x256xf32>
    %349 = arith.mulf %348, %286 : vector<1x256xf32>
    %350 = arith.addf %346, %349 : vector<1x256xf32>
    %c2_113 = arith.constant 2 : index
    %c3_114 = arith.constant 3 : index
    %351 = memref.load %arg2[%c2_113, %c3_114] : memref<3x6xf32, #tpu.memory_space<smem>>
    %352 = vector.broadcast %351 : f32 to vector<1x256xf32>
    %353 = arith.mulf %352, %287 : vector<1x256xf32>
    %354 = arith.addf %350, %353 : vector<1x256xf32>
    %c2_115 = arith.constant 2 : index
    %c4_116 = arith.constant 4 : index
    %355 = memref.load %arg2[%c2_115, %c4_116] : memref<3x6xf32, #tpu.memory_space<smem>>
    %356 = vector.broadcast %355 : f32 to vector<1x256xf32>
    %357 = arith.mulf %356, %254 : vector<1x256xf32>
    %358 = arith.addf %354, %357 : vector<1x256xf32>
    %c2_117 = arith.constant 2 : index
    %c5_118 = arith.constant 5 : index
    %359 = memref.load %arg2[%c2_117, %c5_118] : memref<3x6xf32, #tpu.memory_space<smem>>
    %360 = vector.broadcast %359 : f32 to vector<1x256xf32>
    %361 = arith.mulf %360, %246 : vector<1x256xf32>
    %362 = arith.addf %358, %361 : vector<1x256xf32>
    %363 = math.tanh %362 : vector<1x256xf32>
    %cst_119 = arith.constant 1.000000e-01 : f32
    %364 = vector.broadcast %cst_119 : f32 to vector<1x256xf32>
    %365 = arith.mulf %364, %363 : vector<1x256xf32>
    %366 = arith.addf %21, %313 : vector<1x256xf32>
    %367 = vector.extract_strided_slice %214 {offsets = [1, 0], sizes = [1, 256], strides = [1, 1]} : vector<3x256xf32> to vector<1x256xf32>
    %cst_120 = arith.constant 5.000000e-01 : f32
    %368 = vector.broadcast %cst_120 : f32 to vector<1x256xf32>
    %369 = arith.subf %367, %368 : vector<1x256xf32>
    %370 = arith.mulf %369, %254 : vector<1x256xf32>
    %cst_121 = arith.constant 5.000000e-01 : f32
    %371 = vector.broadcast %cst_121 : f32 to vector<1x256xf32>
    %372 = arith.addf %371, %370 : vector<1x256xf32>
    %373 = arith.addf %372, %339 : vector<1x256xf32>
    %374 = vector.extract_strided_slice %214 {offsets = [2, 0], sizes = [1, 256], strides = [1, 1]} : vector<3x256xf32> to vector<1x256xf32>
    %cst_122 = arith.constant 5.000000e-01 : f32
    %375 = vector.broadcast %cst_122 : f32 to vector<1x256xf32>
    %376 = arith.subf %374, %375 : vector<1x256xf32>
    %377 = arith.mulf %376, %254 : vector<1x256xf32>
    %cst_123 = arith.constant 5.000000e-01 : f32
    %378 = vector.broadcast %cst_123 : f32 to vector<1x256xf32>
    %379 = arith.addf %378, %377 : vector<1x256xf32>
    %380 = arith.addf %379, %365 : vector<1x256xf32>
    %cst_124 = arith.constant 0.000000e+00 : f32
    %381 = vector.broadcast %cst_124 : f32 to vector<6x256xf32>
    %382 = tpu.concatenate %366, %373, %380, %214, %269, %284, %246, %254, %381 in 0 : vector<1x256xf32>, vector<1x256xf32>, vector<1x256xf32>, vector<3x256xf32>, vector<1x256xf32>, vector<1x256xf32>, vector<1x256xf32>, vector<1x256xf32>, vector<6x256xf32> -> vector<16x256xf32>
    %c0_125 = arith.constant 0 : index
    %c0_126 = arith.constant 0 : index
    %383 = vector.load %arg5[%c0_125, %c0_126] : memref<16x256xf32, #tpu.memory_space<vmem>>, vector<16x256xf32>
    tpu.vector_store %arg5[%c0_125, %c0_126], %382 {strides = array<i32>} : memref<16x256xf32, #tpu.memory_space<vmem>>, vector<16x256xf32>,
    return
  }
  func.func @transform_0(%arg0: i32, %arg1: memref<2x2xf32, #tpu.memory_space<smem>>, %arg2: memref<3x6xf32, #tpu.memory_space<smem>>) -> (i32, i32) {
    %c0_i32 = arith.constant 0 : i32
    %c0_i32_0 = arith.constant 0 : i32
    %c0_i32_1 = arith.constant 0 : i32
    return %c0_i32, %c0_i32_0 : i32, i32
  }
  func.func @transform_1(%arg0: i32, %arg1: memref<2x2xf32, #tpu.memory_space<smem>>, %arg2: memref<3x6xf32, #tpu.memory_space<smem>>) -> (i32, i32) {
    %c0_i32 = arith.constant 0 : i32
    %c0_i32_0 = arith.constant 0 : i32
    return %c0_i32, %arg0 : i32, i32
  }
  func.func @transform_2(%arg0: i32, %arg1: memref<2x2xf32, #tpu.memory_space<smem>>, %arg2: memref<3x6xf32, #tpu.memory_space<smem>>) -> (i32, i32) {
    %c0_i32 = arith.constant 0 : i32
    %c0_i32_0 = arith.constant 0 : i32
    return %c0_i32, %arg0 : i32, i32
  }
}

</mosaic_0001>

<llo_original>
// kernel: tpu_custom_call.1
$region0: #{tpu_custom_call.1}
  #allocation0 [shape = 'u32[]', space=smem, size = 0x4, offset = 0x4, fixed_abs, tag = 'smem constant byte address 0x4 - core index']
  #allocation1 [shape = 'u32[144,128]{1,0:T(1,128)}', space=vmem, size = 0x12000, scoped, tag = 'internal scratch']
  #allocation2 [shape = 's32[1]{0}', space=sflag, size = 0x4, scoped, tag = 'scoped memory for tpu_custom_call.1']
  #allocation3 [shape = 'u8[1024]{0}', space=smem, size = 0x400, scoped, tag = 'prefetched SMEM operand 0']
  #allocation4 [shape = 'u8[2048]{0}', space=smem, size = 0x800, scoped, tag = 'prefetched SMEM operand 1']
  %s0 = inlined_call_operand.hbm [shape: f32[2,2], index: 0, kind: input, shape index: {}]
  %s1 = inlined_call_operand.hbm [shape: f32[3,6], index: 1, kind: input, shape index: {}]
  %s2 = inlined_call_operand.hbm [shape: f32[5,256], index: 2, kind: input, shape index: {}]
  %s3 = inlined_call_operand.vmem [shape: f32[3,256], index: 3, kind: input, shape index: {}]
  %s4 = inlined_call_operand.hbm [shape: f32[16,256], index: 4, kind: output, shape index: {}]
  %s5 = sld [smem:[#allocation0]]
  $region22: #{tpu_custom_call.1} parent=0
    _
  %s7 = ssub.s32 1, %s5
  %s8 = scalar_select 0, %s7, %s5
  %10 = dma.hbm_to_smem %s0, 32, [#allocation3], [#allocation2]
  %12 = dma.hbm_to_smem %s1, 64, [#allocation4], [#allocation2]
  %13 = dma.done [#allocation2], 96
  %14 = sfence
  $region1: #{tpu_custom_call.1} parent=0
    #allocation5 [shape = 'u8[8192]{0}', space=vmem, size = 0x2000, scoped, tag = 'input window, operand 2, single buffered']
    #allocation6 [shape = 's32[1]{0}', space=sflag, size = 0x4, scoped, tag = 'scoped memory for tpu_custom_call.1']
    #allocation7 [shape = 's32[1]{0}', space=sflag, size = 0x4, scoped, tag = 'scoped memory for tpu_custom_call.1']
    #allocation8 [shape = 'u8[16384]{0}', space=vmem, size = 0x4000, scoped, tag = 'output window, operand 0, single buffered']
    %15 = vsyncpa [#allocation6], 0
    %16 = vsyncpa [#allocation7], 0
    // Predicated region
    $region2: #{tpu_custom_call.1} parent=1 // pred_check
      _
    $region3: #{tpu_custom_call.1} parent=1 // pred_check_branch
      %18 = sbr.rel (0) target = $region5
    $region4: #{tpu_custom_call.1} parent=1 // pred_region
      %s20 = ssub.s32 256, 256
      %21 = vsyncadd [#allocation6], %s20
      %s23 = sshll.u32 [#allocation5], 4
      %s24 = int_to_ptr.vmem [resolvable:$true] %s23
      %26 = dma.hbm_to_vmem [thread:$0]  %s2, 256, %s24, [#allocation6]
    $region5: #{tpu_custom_call.1} parent=1 // pred_fallthru
      _
    // Predicated region
    $region6: #{tpu_custom_call.1} parent=1 // pred_check
      _
    $region7: #{tpu_custom_call.1} parent=1 // pred_check_branch
      %28 = sbr.rel (0) target = $region9
    $region8: #{tpu_custom_call.1} parent=1 // pred_region
      _
    $region9: #{tpu_custom_call.1} parent=1 // pred_fallthru
      _
    // Predicated region
    $region10: #{tpu_custom_call.1} parent=1 // pred_check
      _
    $region11: #{tpu_custom_call.1} parent=1 // pred_check_branch
      %30 = sbr.rel (0) target = $region13
    $region12: #{tpu_custom_call.1} parent=1 // pred_region
      %31 = dma.done [#allocation6], 256
    $region13: #{tpu_custom_call.1} parent=1 // pred_fallthru
      _
    %s32 = sld [smem:[#allocation3]]
    %s33 = sld [smem:[#allocation3 + $0x1]]
    %s34 = sld [smem:[#allocation3 + $0x80]]
    %s35 = sld [smem:[#allocation3 + $0x81]]
    %v36 = vld [vmem:[#allocation5] sm:$0x1f]
    %v37 = vld [vmem:[#allocation5 + $0x8] sm:$0x1f]
    %v38 = vstv %s32
    %v39 = vmul.f32 %v38, %v36
    %v40 = vmul.f32 %v38, %v37
    %v41 = vstv %s33
    %v42 = vmul.f32 %v41, %v36
    %v43 = vmul.f32 %v41, %v37
    %v46 = vrot.slane %v42, 1
    %v47 = vrot.slane %v43, 1
    %v50 = vadd.f32 %v39, %v46
    %v51 = vadd.f32 %v40, %v47
    %v52 = vstv %s34
    %v53 = vmul.f32 %v52, %v36
    %v54 = vmul.f32 %v52, %v37
    %v55 = vstv %s35
    %v56 = vmul.f32 %v55, %v36
    %v57 = vmul.f32 %v55, %v37
    %v60 = vrot.slane %v56, 1
    %v61 = vrot.slane %v57, 1
    %v64 = vadd.f32 %v53, %v60
    %v65 = vadd.f32 %v54, %v61
    %v68 = vrot.slane %v64, 7
    %v69 = vrot.slane %v65, 7
    %vm72 = vcmask 1042432
    %v73 = vsel %vm72, %v36, %v50
    %v74 = vsel %vm72, %v37, %v51
    %vm75 = vcmask 1043456
    %v76 = vsel %vm75, %v73, %v68
    %v77 = vsel %vm75, %v74, %v69
    %v78 = vpack.c.bf16 %v76, %v76
    %v79 = vpack.c.bf16 %v77, %v77
    %v80 = vld [vmem:[%s3] sm:$0x77]
    %v81 = vmul.f32 %v38, %v80
    %v82 = vmul.f32 %v41, %v80
    %v84 = vrot.slane %v82, 5
    %v85 = vrot.slane %v84, 4
    %v87 = vadd.f32 %v81, %v85
    %v88 = vmul.f32 %v52, %v80
    %v89 = vmul.f32 %v55, %v80
    %v91 = vrot.slane %v89, 5
    %v92 = vrot.slane %v91, 4
    %v94 = vadd.f32 %v88, %v92
    %v95 = vlaneseq
    %v96 = vand.u32 %v95, 127
    %v97 = vadd.s32 %v96, 128
    %s98 = smul.u32 0, 256
    %v99 = vstv %s98
    %v100 = vadd.s32 %v96, %v99
    %v101 = vadd.s32 %v97, %v99
    %v102 = vcvt.s32.f32 %v100
    %v103 = vcvt.s32.f32 %v101
    %v104 = vrcp.pop 16.0
    %v105 = vmul.f32 %v102, %v104
    %v106 = vmul.f32 %v103, %v104
    %v107 = vfloor.f32 %v105
    %v108 = vfloor.f32 %v106
    %v109 = vmul.f32 %v107, 16.0
    %v110 = vmul.f32 %v108, 16.0
    %v111 = vsub.f32 %v102, %v109
    %v112 = vsub.f32 %v103, %v110
    %v114 = vlaneseq
    %v115 = vshrl.u32 %v114, 7
    %v116 = vsub.s32 1, %v115
    %v117 = vrot.slane %v87, %v116
    %v118 = vlaneseq
    %v119 = vshrl.u32 %v118, 7
    %v120 = vsub.s32 5, %v119
    %v121 = vrot.slane %v87, %v120
    %v124 = vadd.f32 %v111, %v117
    %v125 = vadd.f32 %v112, %v121
    %v127 = vlaneseq
    %v128 = vshrl.u32 %v127, 7
    %v129 = vsub.s32 1, %v128
    %v130 = vrot.slane %v94, %v129
    %v131 = vlaneseq
    %v132 = vshrl.u32 %v131, 7
    %v133 = vsub.s32 5, %v132
    %v134 = vrot.slane %v94, %v133
    %v137 = vadd.f32 %v107, %v130
    %v138 = vadd.f32 %v108, %v134
    %v139 = vfloor.f32 %v124
    %v140 = vfloor.f32 %v125
    %v141 = vfloor.f32 %v137
    %v142 = vfloor.f32 %v138
    %v143 = vsub.f32 %v124, %v139
    %v144 = vsub.f32 %v125, %v140
    %v145 = vsub.f32 1.0, %v143
    %v146 = vsub.f32 1.0, %v144
    %v147 = vsub.f32 %v137, %v141
    %v148 = vsub.f32 %v138, %v142
    %v149 = vsub.f32 1.0, %v147
    %v150 = vsub.f32 1.0, %v148
    %v151 = vcvt.f32.s32.to.zero.pseudo %v139
    %v152 = vcvt.f32.s32.to.zero.pseudo %v140
    %v153 = vcvt.f32.s32.to.zero.pseudo %v141
    %v154 = vcvt.f32.s32.to.zero.pseudo %v142
    %v155 = vadd.s32 %v151, 1
    %v156 = vadd.s32 %v152, 1
    %v157 = vadd.s32 %v153, 1
    %v158 = vadd.s32 %v154, 1
    %v159 = vlaneseq
    %v160 = vshrl.u32 %v159, 7
    %v161 = vadd.s32 %v160, 8
    %v162 = vadd.s32 %v160, 16
    %v163 = vadd.s32 %v160, 24
    %v164 = vadd.s32 %v160, 32
    %v165 = vadd.s32 %v160, 40
    %v166 = vadd.s32 %v160, 48
    %v167 = vadd.s32 %v160, 56
    %v168 = vadd.s32 %v160, 64
    %v169 = vadd.s32 %v160, 72
    %v170 = vadd.s32 %v160, 80
    %v171 = vadd.s32 %v160, 88
    %v172 = vadd.s32 %v160, 96
    %v173 = vadd.s32 %v160, 104
    %v174 = vadd.s32 %v160, 112
    %v175 = vadd.s32 %v160, 120
    %v176 = vadd.s32 %v160, 128
    %v177 = vadd.s32 %v160, 136
    %v178 = vadd.s32 %v160, 144
    %v179 = vadd.s32 %v160, 152
    %v180 = vadd.s32 %v160, 160
    %v181 = vadd.s32 %v160, 168
    %v182 = vadd.s32 %v160, 176
    %v183 = vadd.s32 %v160, 184
    %v184 = vadd.s32 %v160, 192
    %v185 = vadd.s32 %v160, 200
    %v186 = vadd.s32 %v160, 208
    %v187 = vadd.s32 %v160, 216
    %v188 = vadd.s32 %v160, 224
    %v189 = vadd.s32 %v160, 232
    %v190 = vadd.s32 %v160, 240
    %v191 = vadd.s32 %v160, 248
    %v192 = vmul.f32 %v145, %v149
    %v193 = vmul.f32 %v146, %v150
    %vm194 = vcmp.ge.s32.totalorder %v151, 0
    %vm195 = vcmp.ge.s32.totalorder %v152, 0
    %vm196 = vcmp.lt.s32.totalorder %v151, 16
    %vm197 = vcmp.lt.s32.totalorder %v152, 16
    %vm198 = vmand %vm194, %vm196
    %vm199 = vmand %vm195, %vm197
    %vm200 = vcmp.ge.s32.totalorder %v153, 0
    %vm201 = vcmp.ge.s32.totalorder %v154, 0
    %vm202 = vmand %vm198, %vm200
    %vm203 = vmand %vm199, %vm201
    %vm204 = vcmp.lt.s32.totalorder %v153, 16
    %vm205 = vcmp.lt.s32.totalorder %v154, 16
    %vm206 = vmand %vm202, %vm204
    %vm207 = vmand %vm203, %vm205
    %vm208 = vcmp.gt.s32.totalorder %v151, 0
    %v209 = vsel %vm208, %v151, 0
    %vm210 = vcmp.gt.s32.totalorder %v152, 0
    %v211 = vsel %vm210, %v152, 0
    %vm212 = vcmp.lt.s32.totalorder %v209, 15
    %v213 = vsel %vm212, %v209, 15
    %vm214 = vcmp.lt.s32.totalorder %v211, 15
    %v215 = vsel %vm214, %v211, 15
    %vm216 = vcmp.gt.s32.totalorder %v153, 0
    %v217 = vsel %vm216, %v153, 0
    %vm218 = vcmp.gt.s32.totalorder %v154, 0
    %v219 = vsel %vm218, %v154, 0
    %vm220 = vcmp.lt.s32.totalorder %v217, 15
    %v221 = vsel %vm220, %v217, 15
    %vm222 = vcmp.lt.s32.totalorder %v219, 15
    %v223 = vsel %vm222, %v219, 15
    %v224 = vmul.u32 %v221, 16
    %v225 = vmul.u32 %v223, 16
    %v226 = vadd.s32 %v224, %v213
    %v227 = vadd.s32 %v225, %v215
    %v228 = vlaneseq
    %v229 = vshrl.u32 %v228, 7
    %v230 = vsub.s32 0, %v229
    %v231 = vrot.slane %v226, %v230
    %v232 = vlaneseq
    %v233 = vshrl.u32 %v232, 7
    %v234 = vsub.s32 0, %v233
    %v235 = vrot.slane %v227, %v234
    %vm236 = vcmp.eq.s32.totalorder %v160, %v231
    %vm237 = vcmp.eq.s32.totalorder %v160, %v235
    %vm238 = vcmp.eq.s32.totalorder %v161, %v231
    %vm239 = vcmp.eq.s32.totalorder %v161, %v235
    %vm240 = vcmp.eq.s32.totalorder %v162, %v231
    %vm241 = vcmp.eq.s32.totalorder %v162, %v235
    %vm242 = vcmp.eq.s32.totalorder %v163, %v231
    %vm243 = vcmp.eq.s32.totalorder %v163, %v235
    %vm244 = vcmp.eq.s32.totalorder %v164, %v231
    %vm245 = vcmp.eq.s32.totalorder %v164, %v235
    %vm246 = vcmp.eq.s32.totalorder %v165, %v231
    %vm247 = vcmp.eq.s32.totalorder %v165, %v235
    %vm248 = vcmp.eq.s32.totalorder %v166, %v231
    %vm249 = vcmp.eq.s32.totalorder %v166, %v235
    %vm250 = vcmp.eq.s32.totalorder %v167, %v231
    %vm251 = vcmp.eq.s32.totalorder %v167, %v235
    %vm252 = vcmp.eq.s32.totalorder %v168, %v231
    %vm253 = vcmp.eq.s32.totalorder %v168, %v235
    %vm254 = vcmp.eq.s32.totalorder %v169, %v231
    %vm255 = vcmp.eq.s32.totalorder %v169, %v235
    %vm256 = vcmp.eq.s32.totalorder %v170, %v231
    %vm257 = vcmp.eq.s32.totalorder %v170, %v235
    %vm258 = vcmp.eq.s32.totalorder %v171, %v231
    %vm259 = vcmp.eq.s32.totalorder %v171, %v235
    %vm260 = vcmp.eq.s32.totalorder %v172, %v231
    %vm261 = vcmp.eq.s32.totalorder %v172, %v235
    %vm262 = vcmp.eq.s32.totalorder %v173, %v231
    %vm263 = vcmp.eq.s32.totalorder %v173, %v235
    %vm264 = vcmp.eq.s32.totalorder %v174, %v231
    %vm265 = vcmp.eq.s32.totalorder %v174, %v235
    %vm266 = vcmp.eq.s32.totalorder %v175, %v231
    %vm267 = vcmp.eq.s32.totalorder %v175, %v235
    %vm268 = vcmp.eq.s32.totalorder %v176, %v231
    %vm269 = vcmp.eq.s32.totalorder %v176, %v235
    %vm270 = vcmp.eq.s32.totalorder %v177, %v231
    %vm271 = vcmp.eq.s32.totalorder %v177, %v235
    %vm272 = vcmp.eq.s32.totalorder %v178, %v231
    %vm273 = vcmp.eq.s32.totalorder %v178, %v235
    %vm274 = vcmp.eq.s32.totalorder %v179, %v231
    %vm275 = vcmp.eq.s32.totalorder %v179, %v235
    %vm276 = vcmp.eq.s32.totalorder %v180, %v231
    %vm277 = vcmp.eq.s32.totalorder %v180, %v235
    %vm278 = vcmp.eq.s32.totalorder %v181, %v231
    %vm279 = vcmp.eq.s32.totalorder %v181, %v235
    %vm280 = vcmp.eq.s32.totalorder %v182, %v231
    %vm281 = vcmp.eq.s32.totalorder %v182, %v235
    %vm282 = vcmp.eq.s32.totalorder %v183, %v231
    %vm283 = vcmp.eq.s32.totalorder %v183, %v235
    %vm284 = vcmp.eq.s32.totalorder %v184, %v231
    %vm285 = vcmp.eq.s32.totalorder %v184, %v235
    %vm286 = vcmp.eq.s32.totalorder %v185, %v231
    %vm287 = vcmp.eq.s32.totalorder %v185, %v235
    %vm288 = vcmp.eq.s32.totalorder %v186, %v231
    %vm289 = vcmp.eq.s32.totalorder %v186, %v235
    %vm290 = vcmp.eq.s32.totalorder %v187, %v231
    %vm291 = vcmp.eq.s32.totalorder %v187, %v235
    %vm292 = vcmp.eq.s32.totalorder %v188, %v231
    %vm293 = vcmp.eq.s32.totalorder %v188, %v235
    %vm294 = vcmp.eq.s32.totalorder %v189, %v231
    %vm295 = vcmp.eq.s32.totalorder %v189, %v235
    %vm296 = vcmp.eq.s32.totalorder %v190, %v231
    %vm297 = vcmp.eq.s32.totalorder %v190, %v235
    %vm298 = vcmp.eq.s32.totalorder %v191, %v231
    %vm299 = vcmp.eq.s32.totalorder %v191, %v235
    %v300 = vsel %vm236, 1, 0
    %v301 = vsel %vm237, 1, 0
    %v302 = vsel %vm238, 1, 0
    %v303 = vsel %vm239, 1, 0
    %v304 = vsel %vm240, 1, 0
    %v305 = vsel %vm241, 1, 0
    %v306 = vsel %vm242, 1, 0
    %v307 = vsel %vm243, 1, 0
    %v308 = vsel %vm244, 1, 0
    %v309 = vsel %vm245, 1, 0
    %v310 = vsel %vm246, 1, 0
    %v311 = vsel %vm247, 1, 0
    %v312 = vsel %vm248, 1, 0
    %v313 = vsel %vm249, 1, 0
    %v314 = vsel %vm250, 1, 0
    %v315 = vsel %vm251, 1, 0
    %v316 = vsel %vm252, 1, 0
    %v317 = vsel %vm253, 1, 0
    %v318 = vsel %vm254, 1, 0
    %v319 = vsel %vm255, 1, 0
    %v320 = vsel %vm256, 1, 0
    %v321 = vsel %vm257, 1, 0
    %v322 = vsel %vm258, 1, 0
    %v323 = vsel %vm259, 1, 0
    %v324 = vsel %vm260, 1, 0
    %v325 = vsel %vm261, 1, 0
    %v326 = vsel %vm262, 1, 0
    %v327 = vsel %vm263, 1, 0
    %v328 = vsel %vm264, 1, 0
    %v329 = vsel %vm265, 1, 0
    %v330 = vsel %vm266, 1, 0
    %v331 = vsel %vm267, 1, 0
    %v332 = vsel %vm268, 1, 0
    %v333 = vsel %vm269, 1, 0
    %v334 = vsel %vm270, 1, 0
    %v335 = vsel %vm271, 1, 0
    %v336 = vsel %vm272, 1, 0
    %v337 = vsel %vm273, 1, 0
    %v338 = vsel %vm274, 1, 0
    %v339 = vsel %vm275, 1, 0
    %v340 = vsel %vm276, 1, 0
    %v341 = vsel %vm277, 1, 0
    %v342 = vsel %vm278, 1, 0
    %v343 = vsel %vm279, 1, 0
    %v344 = vsel %vm280, 1, 0
    %v345 = vsel %vm281, 1, 0
    %v346 = vsel %vm282, 1, 0
    %v347 = vsel %vm283, 1, 0
    %v348 = vsel %vm284, 1, 0
    %v349 = vsel %vm285, 1, 0
    %v350 = vsel %vm286, 1, 0
    %v351 = vsel %vm287, 1, 0
    %v352 = vsel %vm288, 1, 0
    %v353 = vsel %vm289, 1, 0
    %v354 = vsel %vm290, 1, 0
    %v355 = vsel %vm291, 1, 0
    %v356 = vsel %vm292, 1, 0
    %v357 = vsel %vm293, 1, 0
    %v358 = vsel %vm294, 1, 0
    %v359 = vsel %vm295, 1, 0
    %v360 = vsel %vm296, 1, 0
    %v361 = vsel %vm297, 1, 0
    %v362 = vsel %vm298, 1, 0
    %v363 = vsel %vm299, 1, 0
    %v364 = vcvt.s32.f32 %v300
    %v365 = vcvt.s32.f32 %v301
    %v366 = vcvt.s32.f32 %v302
    %v367 = vcvt.s32.f32 %v303
    %v368 = vcvt.s32.f32 %v304
    %v369 = vcvt.s32.f32 %v305
    %v370 = vcvt.s32.f32 %v306
    %v371 = vcvt.s32.f32 %v307
    %v372 = vcvt.s32.f32 %v308
    %v373 = vcvt.s32.f32 %v309
    %v374 = vcvt.s32.f32 %v310
    %v375 = vcvt.s32.f32 %v311
    %v376 = vcvt.s32.f32 %v312
    %v377 = vcvt.s32.f32 %v313
    %v378 = vcvt.s32.f32 %v314
    %v379 = vcvt.s32.f32 %v315
    %v380 = vcvt.s32.f32 %v316
    %v381 = vcvt.s32.f32 %v317
    %v382 = vcvt.s32.f32 %v318
    %v383 = vcvt.s32.f32 %v319
    %v384 = vcvt.s32.f32 %v320
    %v385 = vcvt.s32.f32 %v321
    %v386 = vcvt.s32.f32 %v322
    %v387 = vcvt.s32.f32 %v323
    %v388 = vcvt.s32.f32 %v324
    %v389 = vcvt.s32.f32 %v325
    %v390 = vcvt.s32.f32 %v326
    %v391 = vcvt.s32.f32 %v327
    %v392 = vcvt.s32.f32 %v328
    %v393 = vcvt.s32.f32 %v329
    %v394 = vcvt.s32.f32 %v330
    %v395 = vcvt.s32.f32 %v331
    %v396 = vcvt.s32.f32 %v332
    %v397 = vcvt.s32.f32 %v333
    %v398 = vcvt.s32.f32 %v334
    %v399 = vcvt.s32.f32 %v335
    %v400 = vcvt.s32.f32 %v336
    %v401 = vcvt.s32.f32 %v337
    %v402 = vcvt.s32.f32 %v338
    %v403 = vcvt.s32.f32 %v339
    %v404 = vcvt.s32.f32 %v340
    %v405 = vcvt.s32.f32 %v341
    %v406 = vcvt.s32.f32 %v342
    %v407 = vcvt.s32.f32 %v343
    %v408 = vcvt.s32.f32 %v344
    %v409 = vcvt.s32.f32 %v345
    %v410 = vcvt.s32.f32 %v346
    %v411 = vcvt.s32.f32 %v347
    %v412 = vcvt.s32.f32 %v348
    %v413 = vcvt.s32.f32 %v349
    %v414 = vcvt.s32.f32 %v350
    %v415 = vcvt.s32.f32 %v351
    %v416 = vcvt.s32.f32 %v352
    %v417 = vcvt.s32.f32 %v353
    %v418 = vcvt.s32.f32 %v354
    %v419 = vcvt.s32.f32 %v355
    %v420 = vcvt.s32.f32 %v356
    %v421 = vcvt.s32.f32 %v357
    %v422 = vcvt.s32.f32 %v358
    %v423 = vcvt.s32.f32 %v359
    %v424 = vcvt.s32.f32 %v360
    %v425 = vcvt.s32.f32 %v361
    %v426 = vcvt.s32.f32 %v362
    %v427 = vcvt.s32.f32 %v363
    %v428 = vpack.c.bf16 %v366, %v364
    %v429 = vpack.c.bf16 %v367, %v365
    %v430 = vpack.c.bf16 %v370, %v368
    %v431 = vpack.c.bf16 %v371, %v369
    %v432 = vpack.c.bf16 %v374, %v372
    %v433 = vpack.c.bf16 %v375, %v373
    %v434 = vpack.c.bf16 %v378, %v376
    %v435 = vpack.c.bf16 %v379, %v377
    %v436 = vpack.c.bf16 %v382, %v380
    %v437 = vpack.c.bf16 %v383, %v381
    %v438 = vpack.c.bf16 %v386, %v384
    %v439 = vpack.c.bf16 %v387, %v385
    %v440 = vpack.c.bf16 %v390, %v388
    %v441 = vpack.c.bf16 %v391, %v389
    %v442 = vpack.c.bf16 %v394, %v392
    %v443 = vpack.c.bf16 %v395, %v393
    %v444 = vpack.c.bf16 %v398, %v396
    %v445 = vpack.c.bf16 %v399, %v397
    %v446 = vpack.c.bf16 %v402, %v400
    %v447 = vpack.c.bf16 %v403, %v401
    %v448 = vpack.c.bf16 %v406, %v404
    %v449 = vpack.c.bf16 %v407, %v405
    %v450 = vpack.c.bf16 %v410, %v408
    %v451 = vpack.c.bf16 %v411, %v409
    %v452 = vpack.c.bf16 %v414, %v412
    %v453 = vpack.c.bf16 %v415, %v413
    %v454 = vpack.c.bf16 %v418, %v416
    %v455 = vpack.c.bf16 %v419, %v417
    %v456 = vpack.c.bf16 %v422, %v420
    %v457 = vpack.c.bf16 %v423, %v421
    %v458 = vpack.c.bf16 %v426, %v424
    %v459 = vpack.c.bf16 %v427, %v425
    %460 = vmatprep.subr.bf16.mxu0 %v429
    %461 = vmatpush1.bf16.msra.mxu0 %v428
    %462 = vmatprep.subr.bf16.mxu0 %v431
    %463 = vmatpush1.bf16.msra.mxu0 %v430
    %464 = vmatprep.subr.bf16.mxu0 %v433
    %465 = vmatpush1.bf16.msra.mxu0 %v432
    %466 = vmatprep.subr.bf16.mxu0 %v435
    %467 = vmatpush1.bf16.msra.mxu0 %v434
    %468 = vmatprep.subr.bf16.mxu0 %v437
    %469 = vmatpush1.bf16.msra.mxu0 %v436
    %470 = vmatprep.subr.bf16.mxu0 %v439
    %471 = vmatpush1.bf16.msra.mxu0 %v438
    %472 = vmatprep.subr.bf16.mxu0 %v441
    %473 = vmatpush1.bf16.msra.mxu0 %v440
    %474 = vmatprep.subr.bf16.mxu0 %v443
    %475 = vmatpush1.bf16.msra.mxu0 %v442
    %476 = vmatprep.subr.bf16.mxu0 %v445
    %477 = vmatpush1.bf16.msra.mxu0 %v444
    %478 = vmatprep.subr.bf16.mxu0 %v447
    %479 = vmatpush1.bf16.msra.mxu0 %v446
    %480 = vmatprep.subr.bf16.mxu0 %v449
    %481 = vmatpush1.bf16.msra.mxu0 %v448
    %482 = vmatprep.subr.bf16.mxu0 %v451
    %483 = vmatpush1.bf16.msra.mxu0 %v450
    %484 = vmatprep.subr.bf16.mxu0 %v453
    %485 = vmatpush1.bf16.msra.mxu0 %v452
    %486 = vmatprep.subr.bf16.mxu0 %v455
    %487 = vmatpush1.bf16.msra.mxu0 %v454
    %488 = vmatprep.subr.bf16.mxu0 %v457
    %489 = vmatpush1.bf16.msra.mxu0 %v456
    %490 = vmatprep.subr.bf16.mxu0 %v459
    %491 = vmatpush1.bf16.msra.mxu0 %v458
    %492 = vmatprep.mubr.bf16.mxu0 %v79
    %493 = vmatmul.mubr.bf16.gmra.mrb[0].mxu0 %v78
    %v494 = vpop.f32.mrb[0].mxu0
    %v495 = vadd.f32 0.0, %v494
    %v496 = vpop.f32.mrb[0].mxu0
    %v497 = vadd.f32 0.0, %v496
    %v498 = vpop.f32.mrb[0].mxu0
    %v499 = vpop.f32.mrb[0].mxu0
    %500 = vdwg.mxu0
    %v501 = vsel %vm206, %v192, 0.0
    %v502 = vsel %vm207, %v193, 0.0
    %v503 = vlaneseq
    %v504 = vshrl.u32 %v503, 7
    %v505 = vsub.s32 0, %v504
    %v506 = vrot.slane %v501, %v505
    %v507 = vlaneseq
    %v508 = vshrl.u32 %v507, 7
    %v509 = vsub.s32 0, %v508
    %v510 = vrot.slane %v502, %v509
    %v511 = vmul.f32 %v495, %v506
    %v512 = vmul.f32 %v497, %v510
    %v513 = vadd.f32 %v511, 0.0
    %v514 = vadd.f32 %v512, 0.0
    %v515 = vadd.f32 %v501, 0.0
    %v516 = vadd.f32 %v502, 0.0
    %v517 = vmul.f32 %v143, %v149
    %v518 = vmul.f32 %v144, %v150
    %vm519 = vcmp.ge.s32.totalorder %v155, 0
    %vm520 = vcmp.ge.s32.totalorder %v156, 0
    %vm521 = vcmp.lt.s32.totalorder %v155, 16
    %vm522 = vcmp.lt.s32.totalorder %v156, 16
    %vm523 = vmand %vm519, %vm521
    %vm524 = vmand %vm520, %vm522
    %vm525 = vmand %vm523, %vm200
    %vm526 = vmand %vm524, %vm201
    %vm527 = vmand %vm525, %vm204
    %vm528 = vmand %vm526, %vm205
    %vm529 = vcmp.gt.s32.totalorder %v155, 0
    %v530 = vsel %vm529, %v155, 0
    %vm531 = vcmp.gt.s32.totalorder %v156, 0
    %v532 = vsel %vm531, %v156, 0
    %vm533 = vcmp.lt.s32.totalorder %v530, 15
    %v534 = vsel %vm533, %v530, 15
    %vm535 = vcmp.lt.s32.totalorder %v532, 15
    %v536 = vsel %vm535, %v532, 15
    %v537 = vadd.s32 %v224, %v534
    %v538 = vadd.s32 %v225, %v536
    %v539 = vlaneseq
    %v540 = vshrl.u32 %v539, 7
    %v541 = vsub.s32 0, %v540
    %v542 = vrot.slane %v537, %v541
    %v543 = vlaneseq
    %v544 = vshrl.u32 %v543, 7
    %v545 = vsub.s32 0, %v544
    %v546 = vrot.slane %v538, %v545
    %vm547 = vcmp.eq.s32.totalorder %v160, %v542
    %vm548 = vcmp.eq.s32.totalorder %v160, %v546
    %vm549 = vcmp.eq.s32.totalorder %v161, %v542
    %vm550 = vcmp.eq.s32.totalorder %v161, %v546
    %vm551 = vcmp.eq.s32.totalorder %v162, %v542
    %vm552 = vcmp.eq.s32.totalorder %v162, %v546
    %vm553 = vcmp.eq.s32.totalorder %v163, %v542
    %vm554 = vcmp.eq.s32.totalorder %v163, %v546
    %vm555 = vcmp.eq.s32.totalorder %v164, %v542
    %vm556 = vcmp.eq.s32.totalorder %v164, %v546
    %vm557 = vcmp.eq.s32.totalorder %v165, %v542
    %vm558 = vcmp.eq.s32.totalorder %v165, %v546
    %vm559 = vcmp.eq.s32.totalorder %v166, %v542
    %vm560 = vcmp.eq.s32.totalorder %v166, %v546
    %vm561 = vcmp.eq.s32.totalorder %v167, %v542
    %vm562 = vcmp.eq.s32.totalorder %v167, %v546
    %vm563 = vcmp.eq.s32.totalorder %v168, %v542
    %vm564 = vcmp.eq.s32.totalorder %v168, %v546
    %vm565 = vcmp.eq.s32.totalorder %v169, %v542
    %vm566 = vcmp.eq.s32.totalorder %v169, %v546
    %vm567 = vcmp.eq.s32.totalorder %v170, %v542
    %vm568 = vcmp.eq.s32.totalorder %v170, %v546
    %vm569 = vcmp.eq.s32.totalorder %v171, %v542
    %vm570 = vcmp.eq.s32.totalorder %v171, %v546
    %vm571 = vcmp.eq.s32.totalorder %v172, %v542
    %vm572 = vcmp.eq.s32.totalorder %v172, %v546
    %vm573 = vcmp.eq.s32.totalorder %v173, %v542
    %vm574 = vcmp.eq.s32.totalorder %v173, %v546
    %vm575 = vcmp.eq.s32.totalorder %v174, %v542
    %vm576 = vcmp.eq.s32.totalorder %v174, %v546
    %vm577 = vcmp.eq.s32.totalorder %v175, %v542
    %vm578 = vcmp.eq.s32.totalorder %v175, %v546
    %vm579 = vcmp.eq.s32.totalorder %v176, %v542
    %vm580 = vcmp.eq.s32.totalorder %v176, %v546
    %vm581 = vcmp.eq.s32.totalorder %v177, %v542
    %vm582 = vcmp.eq.s32.totalorder %v177, %v546
    %vm583 = vcmp.eq.s32.totalorder %v178, %v542
    %vm584 = vcmp.eq.s32.totalorder %v178, %v546
    %vm585 = vcmp.eq.s32.totalorder %v179, %v542
    %vm586 = vcmp.eq.s32.totalorder %v179, %v546
    %vm587 = vcmp.eq.s32.totalorder %v180, %v542
    %vm588 = vcmp.eq.s32.totalorder %v180, %v546
    %vm589 = vcmp.eq.s32.totalorder %v181, %v542
    %vm590 = vcmp.eq.s32.totalorder %v181, %v546
    %vm591 = vcmp.eq.s32.totalorder %v182, %v542
    %vm592 = vcmp.eq.s32.totalorder %v182, %v546
    %vm593 = vcmp.eq.s32.totalorder %v183, %v542
    %vm594 = vcmp.eq.s32.totalorder %v183, %v546
    %vm595 = vcmp.eq.s32.totalorder %v184, %v542
    %vm596 = vcmp.eq.s32.totalorder %v184, %v546
    %vm597 = vcmp.eq.s32.totalorder %v185, %v542
    %vm598 = vcmp.eq.s32.totalorder %v185, %v546
    %vm599 = vcmp.eq.s32.totalorder %v186, %v542
    %vm600 = vcmp.eq.s32.totalorder %v186, %v546
    %vm601 = vcmp.eq.s32.totalorder %v187, %v542
    %vm602 = vcmp.eq.s32.totalorder %v187, %v546
    %vm603 = vcmp.eq.s32.totalorder %v188, %v542
    %vm604 = vcmp.eq.s32.totalorder %v188, %v546
    %vm605 = vcmp.eq.s32.totalorder %v189, %v542
    %vm606 = vcmp.eq.s32.totalorder %v189, %v546
    %vm607 = vcmp.eq.s32.totalorder %v190, %v542
    %vm608 = vcmp.eq.s32.totalorder %v190, %v546
    %vm609 = vcmp.eq.s32.totalorder %v191, %v542
    %vm610 = vcmp.eq.s32.totalorder %v191, %v546
    %v611 = vsel %vm547, 1, 0
    %v612 = vsel %vm548, 1, 0
    %v613 = vsel %vm549, 1, 0
    %v614 = vsel %vm550, 1, 0
    %v615 = vsel %vm551, 1, 0
    %v616 = vsel %vm552, 1, 0
    %v617 = vsel %vm553, 1, 0
    %v618 = vsel %vm554, 1, 0
    %v619 = vsel %vm555, 1, 0
    %v620 = vsel %vm556, 1, 0
    %v621 = vsel %vm557, 1, 0
    %v622 = vsel %vm558, 1, 0
    %v623 = vsel %vm559, 1, 0
    %v624 = vsel %vm560, 1, 0
    %v625 = vsel %vm561, 1, 0
    %v626 = vsel %vm562, 1, 0
    %v627 = vsel %vm563, 1, 0
    %v628 = vsel %vm564, 1, 0
    %v629 = vsel %vm565, 1, 0
    %v630 = vsel %vm566, 1, 0
    %v631 = vsel %vm567, 1, 0
    %v632 = vsel %vm568, 1, 0
    %v633 = vsel %vm569, 1, 0
    %v634 = vsel %vm570, 1, 0
    %v635 = vsel %vm571, 1, 0
    %v636 = vsel %vm572, 1, 0
    %v637 = vsel %vm573, 1, 0
    %v638 = vsel %vm574, 1, 0
    %v639 = vsel %vm575, 1, 0
    %v640 = vsel %vm576, 1, 0
    %v641 = vsel %vm577, 1, 0
    %v642 = vsel %vm578, 1, 0
    %v643 = vsel %vm579, 1, 0
    %v644 = vsel %vm580, 1, 0
    %v645 = vsel %vm581, 1, 0
    %v646 = vsel %vm582, 1, 0
    %v647 = vsel %vm583, 1, 0
    %v648 = vsel %vm584, 1, 0
    %v649 = vsel %vm585, 1, 0
    %v650 = vsel %vm586, 1, 0
    %v651 = vsel %vm587, 1, 0
    %v652 = vsel %vm588, 1, 0
    %v653 = vsel %vm589, 1, 0
    %v654 = vsel %vm590, 1, 0
    %v655 = vsel %vm591, 1, 0
    %v656 = vsel %vm592, 1, 0
    %v657 = vsel %vm593, 1, 0
    %v658 = vsel %vm594, 1, 0
    %v659 = vsel %vm595, 1, 0
    %v660 = vsel %vm596, 1, 0
    %v661 = vsel %vm597, 1, 0
    %v662 = vsel %vm598, 1, 0
    %v663 = vsel %vm599, 1, 0
    %v664 = vsel %vm600, 1, 0
    %v665 = vsel %vm601, 1, 0
    %v666 = vsel %vm602, 1, 0
    %v667 = vsel %vm603, 1, 0
    %v668 = vsel %vm604, 1, 0
    %v669 = vsel %vm605, 1, 0
    %v670 = vsel %vm606, 1, 0
    %v671 = vsel %vm607, 1, 0
    %v672 = vsel %vm608, 1, 0
    %v673 = vsel %vm609, 1, 0
    %v674 = vsel %vm610, 1, 0
    %v675 = vcvt.s32.f32 %v611
    %v676 = vcvt.s32.f32 %v612
    %v677 = vcvt.s32.f32 %v613
    %v678 = vcvt.s32.f32 %v614
    %v679 = vcvt.s32.f32 %v615
    %v680 = vcvt.s32.f32 %v616
    %v681 = vcvt.s32.f32 %v617
    %v682 = vcvt.s32.f32 %v618
    %v683 = vcvt.s32.f32 %v619
    %v684 = vcvt.s32.f32 %v620
    %v685 = vcvt.s32.f32 %v621
    %v686 = vcvt.s32.f32 %v622
    %v687 = vcvt.s32.f32 %v623
    %v688 = vcvt.s32.f32 %v624
    %v689 = vcvt.s32.f32 %v625
    %v690 = vcvt.s32.f32 %v626
    %v691 = vcvt.s32.f32 %v627
    %v692 = vcvt.s32.f32 %v628
    %v693 = vcvt.s32.f32 %v629
    %v694 = vcvt.s32.f32 %v630
    %v695 = vcvt.s32.f32 %v631
    %v696 = vcvt.s32.f32 %v632
    %v697 = vcvt.s32.f32 %v633
    %v698 = vcvt.s32.f32 %v634
    %v699 = vcvt.s32.f32 %v635
    %v700 = vcvt.s32.f32 %v636
    %v701 = vcvt.s32.f32 %v637
    %v702 = vcvt.s32.f32 %v638
    %v703 = vcvt.s32.f32 %v639
    %v704 = vcvt.s32.f32 %v640
    %v705 = vcvt.s32.f32 %v641
    %v706 = vcvt.s32.f32 %v642
    %v707 = vcvt.s32.f32 %v643
    %v708 = vcvt.s32.f32 %v644
    %v709 = vcvt.s32.f32 %v645
    %v710 = vcvt.s32.f32 %v646
    %v711 = vcvt.s32.f32 %v647
    %v712 = vcvt.s32.f32 %v648
    %v713 = vcvt.s32.f32 %v649
    %v714 = vcvt.s32.f32 %v650
    %v715 = vcvt.s32.f32 %v651
    %v716 = vcvt.s32.f32 %v652
    %v717 = vcvt.s32.f32 %v653
    %v718 = vcvt.s32.f32 %v654
    %v719 = vcvt.s32.f32 %v655
    %v720 = vcvt.s32.f32 %v656
    %v721 = vcvt.s32.f32 %v657
    %v722 = vcvt.s32.f32 %v658
    %v723 = vcvt.s32.f32 %v659
    %v724 = vcvt.s32.f32 %v660
    %v725 = vcvt.s32.f32 %v661
    %v726 = vcvt.s32.f32 %v662
    %v727 = vcvt.s32.f32 %v663
    %v728 = vcvt.s32.f32 %v664
    %v729 = vcvt.s32.f32 %v665
    %v730 = vcvt.s32.f32 %v666
    %v731 = vcvt.s32.f32 %v667
    %v732 = vcvt.s32.f32 %v668
    %v733 = vcvt.s32.f32 %v669
    %v734 = vcvt.s32.f32 %v670
    %v735 = vcvt.s32.f32 %v671
    %v736 = vcvt.s32.f32 %v672
    %v737 = vcvt.s32.f32 %v673
    %v738 = vcvt.s32.f32 %v674
    %v739 = vpack.c.bf16 %v677, %v675
    %v740 = vpack.c.bf16 %v678, %v676
    %v741 = vpack.c.bf16 %v681, %v679
    %v742 = vpack.c.bf16 %v682, %v680
    %v743 = vpack.c.bf16 %v685, %v683
    %v744 = vpack.c.bf16 %v686, %v684
    %v745 = vpack.c.bf16 %v689, %v687
    %v746 = vpack.c.bf16 %v690, %v688
    %v747 = vpack.c.bf16 %v693, %v691
    %v748 = vpack.c.bf16 %v694, %v692
    %v749 = vpack.c.bf16 %v697, %v695
    %v750 = vpack.c.bf16 %v698, %v696
    %v751 = vpack.c.bf16 %v701, %v699
    %v752 = vpack.c.bf16 %v702, %v700
    %v753 = vpack.c.bf16 %v705, %v703
    %v754 = vpack.c.bf16 %v706, %v704
    %v755 = vpack.c.bf16 %v709, %v707
    %v756 = vpack.c.bf16 %v710, %v708
    %v757 = vpack.c.bf16 %v713, %v711
    %v758 = vpack.c.bf16 %v714, %v712
    %v759 = vpack.c.bf16 %v717, %v715
    %v760 = vpack.c.bf16 %v718, %v716
    %v761 = vpack.c.bf16 %v721, %v719
    %v762 = vpack.c.bf16 %v722, %v720
    %v763 = vpack.c.bf16 %v725, %v723
    %v764 = vpack.c.bf16 %v726, %v724
    %v765 = vpack.c.bf16 %v729, %v727
    %v766 = vpack.c.bf16 %v730, %v728
    %v767 = vpack.c.bf16 %v733, %v731
    %v768 = vpack.c.bf16 %v734, %v732
    %v769 = vpack.c.bf16 %v737, %v735
    %v770 = vpack.c.bf16 %v738, %v736
    %771 = vmatprep.subr.bf16.mxu0 %v740
    %772 = vmatpush1.bf16.msra.mxu0 %v739
    %773 = vmatprep.subr.bf16.mxu0 %v742
    %774 = vmatpush1.bf16.msra.mxu0 %v741
    %775 = vmatprep.subr.bf16.mxu0 %v744
    %776 = vmatpush1.bf16.msra.mxu0 %v743
    %777 = vmatprep.subr.bf16.mxu0 %v746
    %778 = vmatpush1.bf16.msra.mxu0 %v745
    %779 = vmatprep.subr.bf16.mxu0 %v748
    %780 = vmatpush1.bf16.msra.mxu0 %v747
    %781 = vmatprep.subr.bf16.mxu0 %v750
    %782 = vmatpush1.bf16.msra.mxu0 %v749
    %783 = vmatprep.subr.bf16.mxu0 %v752
    %784 = vmatpush1.bf16.msra.mxu0 %v751
    %785 = vmatprep.subr.bf16.mxu0 %v754
    %786 = vmatpush1.bf16.msra.mxu0 %v753
    %787 = vmatprep.subr.bf16.mxu0 %v756
    %788 = vmatpush1.bf16.msra.mxu0 %v755
    %789 = vmatprep.subr.bf16.mxu0 %v758
    %790 = vmatpush1.bf16.msra.mxu0 %v757
    %791 = vmatprep.subr.bf16.mxu0 %v760
    %792 = vmatpush1.bf16.msra.mxu0 %v759
    %793 = vmatprep.subr.bf16.mxu0 %v762
    %794 = vmatpush1.bf16.msra.mxu0 %v761
    %795 = vmatprep.subr.bf16.mxu0 %v764
    %796 = vmatpush1.bf16.msra.mxu0 %v763
    %797 = vmatprep.subr.bf16.mxu0 %v766
    %798 = vmatpush1.bf16.msra.mxu0 %v765
    %799 = vmatprep.subr.bf16.mxu0 %v768
    %800 = vmatpush1.bf16.msra.mxu0 %v767
    %801 = vmatprep.subr.bf16.mxu0 %v770
    %802 = vmatpush1.bf16.msra.mxu0 %v769
    %803 = vmatprep.mubr.bf16.mxu0 %v79
    %804 = vmatmul.mubr.bf16.gmra.mrb[0].mxu0 %v78
    %v805 = vpop.f32.mrb[0].mxu0
    %v806 = vadd.f32 0.0, %v805
    %v807 = vpop.f32.mrb[0].mxu0
    %v808 = vadd.f32 0.0, %v807
    %v809 = vpop.f32.mrb[0].mxu0
    %v810 = vpop.f32.mrb[0].mxu0
    %811 = vdwg.mxu0
    %v812 = vsel %vm527, %v517, 0.0
    %v813 = vsel %vm528, %v518, 0.0
    %v814 = vlaneseq
    %v815 = vshrl.u32 %v814, 7
    %v816 = vsub.s32 0, %v815
    %v817 = vrot.slane %v812, %v816
    %v818 = vlaneseq
    %v819 = vshrl.u32 %v818, 7
    %v820 = vsub.s32 0, %v819
    %v821 = vrot.slane %v813, %v820
    %v822 = vmul.f32 %v806, %v817
    %v823 = vmul.f32 %v808, %v821
    %v824 = vadd.f32 %v513, %v822
    %v825 = vadd.f32 %v514, %v823
    %v826 = vadd.f32 %v515, %v812
    %v827 = vadd.f32 %v516, %v813
    %v828 = vmul.f32 %v145, %v147
    %v829 = vmul.f32 %v146, %v148
    %vm830 = vcmp.ge.s32.totalorder %v157, 0
    %vm831 = vcmp.ge.s32.totalorder %v158, 0
    %vm832 = vmand %vm198, %vm830
    %vm833 = vmand %vm199, %vm831
    %vm834 = vcmp.lt.s32.totalorder %v157, 16
    %vm835 = vcmp.lt.s32.totalorder %v158, 16
    %vm836 = vmand %vm832, %vm834
    %vm837 = vmand %vm833, %vm835
    %vm838 = vcmp.gt.s32.totalorder %v157, 0
    %v839 = vsel %vm838, %v157, 0
    %vm840 = vcmp.gt.s32.totalorder %v158, 0
    %v841 = vsel %vm840, %v158, 0
    %vm842 = vcmp.lt.s32.totalorder %v839, 15
    %v843 = vsel %vm842, %v839, 15
    %vm844 = vcmp.lt.s32.totalorder %v841, 15
    %v845 = vsel %vm844, %v841, 15
    %v846 = vmul.u32 %v843, 16
    %v847 = vmul.u32 %v845, 16
    %v848 = vadd.s32 %v846, %v213
    %v849 = vadd.s32 %v847, %v215
    %v850 = vlaneseq
    %v851 = vshrl.u32 %v850, 7
    %v852 = vsub.s32 0, %v851
    %v853 = vrot.slane %v848, %v852
    %v854 = vlaneseq
    %v855 = vshrl.u32 %v854, 7
    %v856 = vsub.s32 0, %v855
    %v857 = vrot.slane %v849, %v856
    %vm858 = vcmp.eq.s32.totalorder %v160, %v853
    %vm859 = vcmp.eq.s32.totalorder %v160, %v857
    %vm860 = vcmp.eq.s32.totalorder %v161, %v853
    %vm861 = vcmp.eq.s32.totalorder %v161, %v857
    %vm862 = vcmp.eq.s32.totalorder %v162, %v853
    %vm863 = vcmp.eq.s32.totalorder %v162, %v857
    %vm864 = vcmp.eq.s32.totalorder %v163, %v853
    %vm865 = vcmp.eq.s32.totalorder %v163, %v857
    %vm866 = vcmp.eq.s32.totalorder %v164, %v853
    %vm867 = vcmp.eq.s32.totalorder %v164, %v857
    %vm868 = vcmp.eq.s32.totalorder %v165, %v853
    %vm869 = vcmp.eq.s32.totalorder %v165, %v857
    %vm870 = vcmp.eq.s32.totalorder %v166, %v853
    %vm871 = vcmp.eq.s32.totalorder %v166, %v857
    %vm872 = vcmp.eq.s32.totalorder %v167, %v853
    %vm873 = vcmp.eq.s32.totalorder %v167, %v857
    %vm874 = vcmp.eq.s32.totalorder %v168, %v853
    %vm875 = vcmp.eq.s32.totalorder %v168, %v857
    %vm876 = vcmp.eq.s32.totalorder %v169, %v853
    %vm877 = vcmp.eq.s32.totalorder %v169, %v857
    %vm878 = vcmp.eq.s32.totalorder %v170, %v853
    %vm879 = vcmp.eq.s32.totalorder %v170, %v857
    %vm880 = vcmp.eq.s32.totalorder %v171, %v853
    %vm881 = vcmp.eq.s32.totalorder %v171, %v857
    %vm882 = vcmp.eq.s32.totalorder %v172, %v853
    %vm883 = vcmp.eq.s32.totalorder %v172, %v857
    %vm884 = vcmp.eq.s32.totalorder %v173, %v853
    %vm885 = vcmp.eq.s32.totalorder %v173, %v857
    %vm886 = vcmp.eq.s32.totalorder %v174, %v853
    %vm887 = vcmp.eq.s32.totalorder %v174, %v857
    %vm888 = vcmp.eq.s32.totalorder %v175, %v853
    %vm889 = vcmp.eq.s32.totalorder %v175, %v857
    %vm890 = vcmp.eq.s32.totalorder %v176, %v853
    %vm891 = vcmp.eq.s32.totalorder %v176, %v857
    %vm892 = vcmp.eq.s32.totalorder %v177, %v853
    %vm893 = vcmp.eq.s32.totalorder %v177, %v857
    %vm894 = vcmp.eq.s32.totalorder %v178, %v853
    %vm895 = vcmp.eq.s32.totalorder %v178, %v857
    %vm896 = vcmp.eq.s32.totalorder %v179, %v853
    %vm897 = vcmp.eq.s32.totalorder %v179, %v857
    %vm898 = vcmp.eq.s32.totalorder %v180, %v853
    %vm899 = vcmp.eq.s32.totalorder %v180, %v857
    %vm900 = vcmp.eq.s32.totalorder %v181, %v853
    %vm901 = vcmp.eq.s32.totalorder %v181, %v857
    %vm902 = vcmp.eq.s32.totalorder %v182, %v853
    %vm903 = vcmp.eq.s32.totalorder %v182, %v857
    %vm904 = vcmp.eq.s32.totalorder %v183, %v853
    %vm905 = vcmp.eq.s32.totalorder %v183, %v857
    %vm906 = vcmp.eq.s32.totalorder %v184, %v853
    %vm907 = vcmp.eq.s32.totalorder %v184, %v857
    %vm908 = vcmp.eq.s32.totalorder %v185, %v853
    %vm909 = vcmp.eq.s32.totalorder %v185, %v857
    %vm910 = vcmp.eq.s32.totalorder %v186, %v853
    %vm911 = vcmp.eq.s32.totalorder %v186, %v857
    %vm912 = vcmp.eq.s32.totalorder %v187, %v853
    %vm913 = vcmp.eq.s32.totalorder %v187, %v857
    %vm914 = vcmp.eq.s32.totalorder %v188, %v853
    %vm915 = vcmp.eq.s32.totalorder %v188, %v857
    %vm916 = vcmp.eq.s32.totalorder %v189, %v853
    %vm917 = vcmp.eq.s32.totalorder %v189, %v857
    %vm918 = vcmp.eq.s32.totalorder %v190, %v853
    %vm919 = vcmp.eq.s32.totalorder %v190, %v857
    %vm920 = vcmp.eq.s32.totalorder %v191, %v853
    %vm921 = vcmp.eq.s32.totalorder %v191, %v857
    %v922 = vsel %vm858, 1, 0
    %v923 = vsel %vm859, 1, 0
    %v924 = vsel %vm860, 1, 0
    %v925 = vsel %vm861, 1, 0
    %v926 = vsel %vm862, 1, 0
    %v927 = vsel %vm863, 1, 0
    %v928 = vsel %vm864, 1, 0
    %v929 = vsel %vm865, 1, 0
    %v930 = vsel %vm866, 1, 0
    %v931 = vsel %vm867, 1, 0
    %v932 = vsel %vm868, 1, 0
    %v933 = vsel %vm869, 1, 0
    %v934 = vsel %vm870, 1, 0
    %v935 = vsel %vm871, 1, 0
    %v936 = vsel %vm872, 1, 0
    %v937 = vsel %vm873, 1, 0
    %v938 = vsel %vm874, 1, 0
    %v939 = vsel %vm875, 1, 0
    %v940 = vsel %vm876, 1, 0
    %v941 = vsel %vm877, 1, 0
    %v942 = vsel %vm878, 1, 0
    %v943 = vsel %vm879, 1, 0
    %v944 = vsel %vm880, 1, 0
    %v945 = vsel %vm881, 1, 0
    %v946 = vsel %vm882, 1, 0
    %v947 = vsel %vm883, 1, 0
    %v948 = vsel %vm884, 1, 0
    %v949 = vsel %vm885, 1, 0
    %v950 = vsel %vm886, 1, 0
    %v951 = vsel %vm887, 1, 0
    %v952 = vsel %vm888, 1, 0
    %v953 = vsel %vm889, 1, 0
    %v954 = vsel %vm890, 1, 0
    %v955 = vsel %vm891, 1, 0
    %v956 = vsel %vm892, 1, 0
    %v957 = vsel %vm893, 1, 0
    %v958 = vsel %vm894, 1, 0
    %v959 = vsel %vm895, 1, 0
    %v960 = vsel %vm896, 1, 0
    %v961 = vsel %vm897, 1, 0
    %v962 = vsel %vm898, 1, 0
    %v963 = vsel %vm899, 1, 0
    %v964 = vsel %vm900, 1, 0
    %v965 = vsel %vm901, 1, 0
    %v966 = vsel %vm902, 1, 0
    %v967 = vsel %vm903, 1, 0
    %v968 = vsel %vm904, 1, 0
    %v969 = vsel %vm905, 1, 0
    %v970 = vsel %vm906, 1, 0
    %v971 = vsel %vm907, 1, 0
    %v972 = vsel %vm908, 1, 0
    %v973 = vsel %vm909, 1, 0
    %v974 = vsel %vm910, 1, 0
    %v975 = vsel %vm911, 1, 0
    %v976 = vsel %vm912, 1, 0
    %v977 = vsel %vm913, 1, 0
    %v978 = vsel %vm914, 1, 0
    %v979 = vsel %vm915, 1, 0
    %v980 = vsel %vm916, 1, 0
    %v981 = vsel %vm917, 1, 0
    %v982 = vsel %vm918, 1, 0
    %v983 = vsel %vm919, 1, 0
    %v984 = vsel %vm920, 1, 0
    %v985 = vsel %vm921, 1, 0
    %v986 = vcvt.s32.f32 %v922
    %v987 = vcvt.s32.f32 %v923
    %v988 = vcvt.s32.f32 %v924
    %v989 = vcvt.s32.f32 %v925
    %v990 = vcvt.s32.f32 %v926
    %v991 = vcvt.s32.f32 %v927
    %v992 = vcvt.s32.f32 %v928
    %v993 = vcvt.s32.f32 %v929
    %v994 = vcvt.s32.f32 %v930
    %v995 = vcvt.s32.f32 %v931
    %v996 = vcvt.s32.f32 %v932
    %v997 = vcvt.s32.f32 %v933
    %v998 = vcvt.s32.f32 %v934
    %v999 = vcvt.s32.f32 %v935
    %v1000 = vcvt.s32.f32 %v936
    %v1001 = vcvt.s32.f32 %v937
    %v1002 = vcvt.s32.f32 %v938
    %v1003 = vcvt.s32.f32 %v939
    %v1004 = vcvt.s32.f32 %v940
    %v1005 = vcvt.s32.f32 %v941
    %v1006 = vcvt.s32.f32 %v942
    %v1007 = vcvt.s32.f32 %v943
    %v1008 = vcvt.s32.f32 %v944
    %v1009 = vcvt.s32.f32 %v945
    %v1010 = vcvt.s32.f32 %v946
    %v1011 = vcvt.s32.f32 %v947
    %v1012 = vcvt.s32.f32 %v948
    %v1013 = vcvt.s32.f32 %v949
    %v1014 = vcvt.s32.f32 %v950
    %v1015 = vcvt.s32.f32 %v951
    %v1016 = vcvt.s32.f32 %v952
    %v1017 = vcvt.s32.f32 %v953
    %v1018 = vcvt.s32.f32 %v954
    %v1019 = vcvt.s32.f32 %v955
    %v1020 = vcvt.s32.f32 %v956
    %v1021 = vcvt.s32.f32 %v957
    %v1022 = vcvt.s32.f32 %v958
    %v1023 = vcvt.s32.f32 %v959
    %v1024 = vcvt.s32.f32 %v960
    %v1025 = vcvt.s32.f32 %v961
    %v1026 = vcvt.s32.f32 %v962
    %v1027 = vcvt.s32.f32 %v963
    %v1028 = vcvt.s32.f32 %v964
    %v1029 = vcvt.s32.f32 %v965
    %v1030 = vcvt.s32.f32 %v966
    %v1031 = vcvt.s32.f32 %v967
    %v1032 = vcvt.s32.f32 %v968
    %v1033 = vcvt.s32.f32 %v969
    %v1034 = vcvt.s32.f32 %v970
    %v1035 = vcvt.s32.f32 %v971
    %v1036 = vcvt.s32.f32 %v972
    %v1037 = vcvt.s32.f32 %v973
    %v1038 = vcvt.s32.f32 %v974
    %v1039 = vcvt.s32.f32 %v975
    %v1040 = vcvt.s32.f32 %v976
    %v1041 = vcvt.s32.f32 %v977
    %v1042 = vcvt.s32.f32 %v978
    %v1043 = vcvt.s32.f32 %v979
    %v1044 = vcvt.s32.f32 %v980
    %v1045 = vcvt.s32.f32 %v981
    %v1046 = vcvt.s32.f32 %v982
    %v1047 = vcvt.s32.f32 %v983
    %v1048 = vcvt.s32.f32 %v984
    %v1049 = vcvt.s32.f32 %v985
    %v1050 = vpack.c.bf16 %v988, %v986
    %v1051 = vpack.c.bf16 %v989, %v987
    %v1052 = vpack.c.bf16 %v992, %v990
    %v1053 = vpack.c.bf16 %v993, %v991
    %v1054 = vpack.c.bf16 %v996, %v994
    %v1055 = vpack.c.bf16 %v997, %v995
    %v1056 = vpack.c.bf16 %v1000, %v998
    %v1057 = vpack.c.bf16 %v1001, %v999
    %v1058 = vpack.c.bf16 %v1004, %v1002
    %v1059 = vpack.c.bf16 %v1005, %v1003
    %v1060 = vpack.c.bf16 %v1008, %v1006
    %v1061 = vpack.c.bf16 %v1009, %v1007
    %v1062 = vpack.c.bf16 %v1012, %v1010
    %v1063 = vpack.c.bf16 %v1013, %v1011
    %v1064 = vpack.c.bf16 %v1016, %v1014
    %v1065 = vpack.c.bf16 %v1017, %v1015
    %v1066 = vpack.c.bf16 %v1020, %v1018
    %v1067 = vpack.c.bf16 %v1021, %v1019
    %v1068 = vpack.c.bf16 %v1024, %v1022
    %v1069 = vpack.c.bf16 %v1025, %v1023
    %v1070 = vpack.c.bf16 %v1028, %v1026
    %v1071 = vpack.c.bf16 %v1029, %v1027
    %v1072 = vpack.c.bf16 %v1032, %v1030
    %v1073 = vpack.c.bf16 %v1033, %v1031
    %v1074 = vpack.c.bf16 %v1036, %v1034
    %v1075 = vpack.c.bf16 %v1037, %v1035
    %v1076 = vpack.c.bf16 %v1040, %v1038
    %v1077 = vpack.c.bf16 %v1041, %v1039
    %v1078 = vpack.c.bf16 %v1044, %v1042
    %v1079 = vpack.c.bf16 %v1045, %v1043
    %v1080 = vpack.c.bf16 %v1048, %v1046
    %v1081 = vpack.c.bf16 %v1049, %v1047
    %1082 = vmatprep.subr.bf16.mxu0 %v1051
    %1083 = vmatpush1.bf16.msra.mxu0 %v1050
    %1084 = vmatprep.subr.bf16.mxu0 %v1053
    %1085 = vmatpush1.bf16.msra.mxu0 %v1052
    %1086 = vmatprep.subr.bf16.mxu0 %v1055
    %1087 = vmatpush1.bf16.msra.mxu0 %v1054
    %1088 = vmatprep.subr.bf16.mxu0 %v1057
    %1089 = vmatpush1.bf16.msra.mxu0 %v1056
    %1090 = vmatprep.subr.bf16.mxu0 %v1059
    %1091 = vmatpush1.bf16.msra.mxu0 %v1058
    %1092 = vmatprep.subr.bf16.mxu0 %v1061
    %1093 = vmatpush1.bf16.msra.mxu0 %v1060
    %1094 = vmatprep.subr.bf16.mxu0 %v1063
    %1095 = vmatpush1.bf16.msra.mxu0 %v1062
    %1096 = vmatprep.subr.bf16.mxu0 %v1065
    %1097 = vmatpush1.bf16.msra.mxu0 %v1064
    %1098 = vmatprep.subr.bf16.mxu0 %v1067
    %1099 = vmatpush1.bf16.msra.mxu0 %v1066
    %1100 = vmatprep.subr.bf16.mxu0 %v1069
    %1101 = vmatpush1.bf16.msra.mxu0 %v1068
    %1102 = vmatprep.subr.bf16.mxu0 %v1071
    %1103 = vmatpush1.bf16.msra.mxu0 %v1070
    %1104 = vmatprep.subr.bf16.mxu0 %v1073
    %1105 = vmatpush1.bf16.msra.mxu0 %v1072
    %1106 = vmatprep.subr.bf16.mxu0 %v1075
    %1107 = vmatpush1.bf16.msra.mxu0 %v1074
    %1108 = vmatprep.subr.bf16.mxu0 %v1077
    %1109 = vmatpush1.bf16.msra.mxu0 %v1076
    %1110 = vmatprep.subr.bf16.mxu0 %v1079
    %1111 = vmatpush1.bf16.msra.mxu0 %v1078
    %1112 = vmatprep.subr.bf16.mxu0 %v1081
    %1113 = vmatpush1.bf16.msra.mxu0 %v1080
    %1114 = vmatprep.mubr.bf16.mxu0 %v79
    %1115 = vmatmul.mubr.bf16.gmra.mrb[0].mxu0 %v78
    %v1116 = vpop.f32.mrb[0].mxu0
    %v1117 = vadd.f32 0.0, %v1116
    %v1118 = vpop.f32.mrb[0].mxu0
    %v1119 = vadd.f32 0.0, %v1118
    %v1120 = vpop.f32.mrb[0].mxu0
    %v1121 = vpop.f32.mrb[0].mxu0
    %1122 = vdwg.mxu0
    %v1123 = vsel %vm836, %v828, 0.0
    %v1124 = vsel %vm837, %v829, 0.0
    %v1125 = vlaneseq
    %v1126 = vshrl.u32 %v1125, 7
    %v1127 = vsub.s32 0, %v1126
    %v1128 = vrot.slane %v1123, %v1127
    %v1129 = vlaneseq
    %v1130 = vshrl.u32 %v1129, 7
    %v1131 = vsub.s32 0, %v1130
    %v1132 = vrot.slane %v1124, %v1131
    %v1133 = vmul.f32 %v1117, %v1128
    %v1134 = vmul.f32 %v1119, %v1132
    %v1135 = vadd.f32 %v824, %v1133
    %v1136 = vadd.f32 %v825, %v1134
    %v1137 = vadd.f32 %v826, %v1123
    %v1138 = vadd.f32 %v827, %v1124
    %v1139 = vmul.f32 %v143, %v147
    %v1140 = vmul.f32 %v144, %v148
    %vm1141 = vmand %vm523, %vm830
    %vm1142 = vmand %vm524, %vm831
    %vm1143 = vmand %vm1141, %vm834
    %vm1144 = vmand %vm1142, %vm835
    %v1145 = vadd.s32 %v846, %v534
    %v1146 = vadd.s32 %v847, %v536
    %v1147 = vlaneseq
    %v1148 = vshrl.u32 %v1147, 7
    %v1149 = vsub.s32 0, %v1148
    %v1150 = vrot.slane %v1145, %v1149
    %v1151 = vlaneseq
    %v1152 = vshrl.u32 %v1151, 7
    %v1153 = vsub.s32 0, %v1152
    %v1154 = vrot.slane %v1146, %v1153
    %vm1155 = vcmp.eq.s32.totalorder %v160, %v1150
    %vm1156 = vcmp.eq.s32.totalorder %v160, %v1154
    %vm1157 = vcmp.eq.s32.totalorder %v161, %v1150
    %vm1158 = vcmp.eq.s32.totalorder %v161, %v1154
    %vm1159 = vcmp.eq.s32.totalorder %v162, %v1150
    %vm1160 = vcmp.eq.s32.totalorder %v162, %v1154
    %vm1161 = vcmp.eq.s32.totalorder %v163, %v1150
    %vm1162 = vcmp.eq.s32.totalorder %v163, %v1154
    %vm1163 = vcmp.eq.s32.totalorder %v164, %v1150
    %vm1164 = vcmp.eq.s32.totalorder %v164, %v1154
    %vm1165 = vcmp.eq.s32.totalorder %v165, %v1150
    %vm1166 = vcmp.eq.s32.totalorder %v165, %v1154
    %vm1167 = vcmp.eq.s32.totalorder %v166, %v1150
    %vm1168 = vcmp.eq.s32.totalorder %v166, %v1154
    %vm1169 = vcmp.eq.s32.totalorder %v167, %v1150
    %vm1170 = vcmp.eq.s32.totalorder %v167, %v1154
    %vm1171 = vcmp.eq.s32.totalorder %v168, %v1150
    %vm1172 = vcmp.eq.s32.totalorder %v168, %v1154
    %vm1173 = vcmp.eq.s32.totalorder %v169, %v1150
    %vm1174 = vcmp.eq.s32.totalorder %v169, %v1154
    %vm1175 = vcmp.eq.s32.totalorder %v170, %v1150
    %vm1176 = vcmp.eq.s32.totalorder %v170, %v1154
    %vm1177 = vcmp.eq.s32.totalorder %v171, %v1150
    %vm1178 = vcmp.eq.s32.totalorder %v171, %v1154
    %vm1179 = vcmp.eq.s32.totalorder %v172, %v1150
    %vm1180 = vcmp.eq.s32.totalorder %v172, %v1154
    %vm1181 = vcmp.eq.s32.totalorder %v173, %v1150
    %vm1182 = vcmp.eq.s32.totalorder %v173, %v1154
    %vm1183 = vcmp.eq.s32.totalorder %v174, %v1150
    %vm1184 = vcmp.eq.s32.totalorder %v174, %v1154
    %vm1185 = vcmp.eq.s32.totalorder %v175, %v1150
    %vm1186 = vcmp.eq.s32.totalorder %v175, %v1154
    %vm1187 = vcmp.eq.s32.totalorder %v176, %v1150
    %vm1188 = vcmp.eq.s32.totalorder %v176, %v1154
    %vm1189 = vcmp.eq.s32.totalorder %v177, %v1150
    %vm1190 = vcmp.eq.s32.totalorder %v177, %v1154
    %vm1191 = vcmp.eq.s32.totalorder %v178, %v1150
    %vm1192 = vcmp.eq.s32.totalorder %v178, %v1154
    %vm1193 = vcmp.eq.s32.totalorder %v179, %v1150
    %vm1194 = vcmp.eq.s32.totalorder %v179, %v1154
    %vm1195 = vcmp.eq.s32.totalorder %v180, %v1150
    %vm1196 = vcmp.eq.s32.totalorder %v180, %v1154
    %vm1197 = vcmp.eq.s32.totalorder %v181, %v1150
    %vm1198 = vcmp.eq.s32.totalorder %v181, %v1154
    %vm1199 = vcmp.eq.s32.totalorder %v182, %v1150
    %vm1200 = vcmp.eq.s32.totalorder %v182, %v1154
    %vm1201 = vcmp.eq.s32.totalorder %v183, %v1150
    %vm1202 = vcmp.eq.s32.totalorder %v183, %v1154
    %vm1203 = vcmp.eq.s32.totalorder %v184, %v1150
    %vm1204 = vcmp.eq.s32.totalorder %v184, %v1154
    %vm1205 = vcmp.eq.s32.totalorder %v185, %v1150
    %vm1206 = vcmp.eq.s32.totalorder %v185, %v1154
    %vm1207 = vcmp.eq.s32.totalorder %v186, %v1150
    %vm1208 = vcmp.eq.s32.totalorder %v186, %v1154
    %vm1209 = vcmp.eq.s32.totalorder %v187, %v1150
    %vm1210 = vcmp.eq.s32.totalorder %v187, %v1154
    %vm1211 = vcmp.eq.s32.totalorder %v188, %v1150
    %vm1212 = vcmp.eq.s32.totalorder %v188, %v1154
    %vm1213 = vcmp.eq.s32.totalorder %v189, %v1150
    %vm1214 = vcmp.eq.s32.totalorder %v189, %v1154
    %vm1215 = vcmp.eq.s32.totalorder %v190, %v1150
    %vm1216 = vcmp.eq.s32.totalorder %v190, %v1154
    %vm1217 = vcmp.eq.s32.totalorder %v191, %v1150
    %vm1218 = vcmp.eq.s32.totalorder %v191, %v1154
    %v1219 = vsel %vm1155, 1, 0
    %v1220 = vsel %vm1156, 1, 0
    %v1221 = vsel %vm1157, 1, 0
    %v1222 = vsel %vm1158, 1, 0
    %v1223 = vsel %vm1159, 1, 0
    %v1224 = vsel %vm1160, 1, 0
    %v1225 = vsel %vm1161, 1, 0
    %v1226 = vsel %vm1162, 1, 0
    %v1227 = vsel %vm1163, 1, 0
    %v1228 = vsel %vm1164, 1, 0
    %v1229 = vsel %vm1165, 1, 0
    %v1230 = vsel %vm1166, 1, 0
    %v1231 = vsel %vm1167, 1, 0
    %v1232 = vsel %vm1168, 1, 0
    %v1233 = vsel %vm1169, 1, 0
    %v1234 = vsel %vm1170, 1, 0
    %v1235 = vsel %vm1171, 1, 0
    %v1236 = vsel %vm1172, 1, 0
    %v1237 = vsel %vm1173, 1, 0
    %v1238 = vsel %vm1174, 1, 0
    %v1239 = vsel %vm1175, 1, 0
    %v1240 = vsel %vm1176, 1, 0
    %v1241 = vsel %vm1177, 1, 0
    %v1242 = vsel %vm1178, 1, 0
    %v1243 = vsel %vm1179, 1, 0
    %v1244 = vsel %vm1180, 1, 0
    %v1245 = vsel %vm1181, 1, 0
    %v1246 = vsel %vm1182, 1, 0
    %v1247 = vsel %vm1183, 1, 0
    %v1248 = vsel %vm1184, 1, 0
    %v1249 = vsel %vm1185, 1, 0
    %v1250 = vsel %vm1186, 1, 0
    %v1251 = vsel %vm1187, 1, 0
    %v1252 = vsel %vm1188, 1, 0
    %v1253 = vsel %vm1189, 1, 0
    %v1254 = vsel %vm1190, 1, 0
    %v1255 = vsel %vm1191, 1, 0
    %v1256 = vsel %vm1192, 1, 0
    %v1257 = vsel %vm1193, 1, 0
    %v1258 = vsel %vm1194, 1, 0
    %v1259 = vsel %vm1195, 1, 0
    %v1260 = vsel %vm1196, 1, 0
    %v1261 = vsel %vm1197, 1, 0
    %v1262 = vsel %vm1198, 1, 0
    %v1263 = vsel %vm1199, 1, 0
    %v1264 = vsel %vm1200, 1, 0
    %v1265 = vsel %vm1201, 1, 0
    %v1266 = vsel %vm1202, 1, 0
    %v1267 = vsel %vm1203, 1, 0
    %v1268 = vsel %vm1204, 1, 0
    %v1269 = vsel %vm1205, 1, 0
    %v1270 = vsel %vm1206, 1, 0
    %v1271 = vsel %vm1207, 1, 0
    %v1272 = vsel %vm1208, 1, 0
    %v1273 = vsel %vm1209, 1, 0
    %v1274 = vsel %vm1210, 1, 0
    %v1275 = vsel %vm1211, 1, 0
    %v1276 = vsel %vm1212, 1, 0
    %v1277 = vsel %vm1213, 1, 0
    %v1278 = vsel %vm1214, 1, 0
    %v1279 = vsel %vm1215, 1, 0
    %v1280 = vsel %vm1216, 1, 0
    %v1281 = vsel %vm1217, 1, 0
    %v1282 = vsel %vm1218, 1, 0
    %v1283 = vcvt.s32.f32 %v1219
    %v1284 = vcvt.s32.f32 %v1220
    %v1285 = vcvt.s32.f32 %v1221
    %v1286 = vcvt.s32.f32 %v1222
    %v1287 = vcvt.s32.f32 %v1223
    %v1288 = vcvt.s32.f32 %v1224
    %v1289 = vcvt.s32.f32 %v1225
    %v1290 = vcvt.s32.f32 %v1226
    %v1291 = vcvt.s32.f32 %v1227
    %v1292 = vcvt.s32.f32 %v1228
    %v1293 = vcvt.s32.f32 %v1229
    %v1294 = vcvt.s32.f32 %v1230
    %v1295 = vcvt.s32.f32 %v1231
    %v1296 = vcvt.s32.f32 %v1232
    %v1297 = vcvt.s32.f32 %v1233
    %v1298 = vcvt.s32.f32 %v1234
    %v1299 = vcvt.s32.f32 %v1235
    %v1300 = vcvt.s32.f32 %v1236
    %v1301 = vcvt.s32.f32 %v1237
    %v1302 = vcvt.s32.f32 %v1238
    %v1303 = vcvt.s32.f32 %v1239
    %v1304 = vcvt.s32.f32 %v1240
    %v1305 = vcvt.s32.f32 %v1241
    %v1306 = vcvt.s32.f32 %v1242
    %v1307 = vcvt.s32.f32 %v1243
    %v1308 = vcvt.s32.f32 %v1244
    %v1309 = vcvt.s32.f32 %v1245
    %v1310 = vcvt.s32.f32 %v1246
    %v1311 = vcvt.s32.f32 %v1247
    %v1312 = vcvt.s32.f32 %v1248
    %v1313 = vcvt.s32.f32 %v1249
    %v1314 = vcvt.s32.f32 %v1250
    %v1315 = vcvt.s32.f32 %v1251
    %v1316 = vcvt.s32.f32 %v1252
    %v1317 = vcvt.s32.f32 %v1253
    %v1318 = vcvt.s32.f32 %v1254
    %v1319 = vcvt.s32.f32 %v1255
    %v1320 = vcvt.s32.f32 %v1256
    %v1321 = vcvt.s32.f32 %v1257
    %v1322 = vcvt.s32.f32 %v1258
    %v1323 = vcvt.s32.f32 %v1259
    %v1324 = vcvt.s32.f32 %v1260
    %v1325 = vcvt.s32.f32 %v1261
    %v1326 = vcvt.s32.f32 %v1262
    %v1327 = vcvt.s32.f32 %v1263
    %v1328 = vcvt.s32.f32 %v1264
    %v1329 = vcvt.s32.f32 %v1265
    %v1330 = vcvt.s32.f32 %v1266
    %v1331 = vcvt.s32.f32 %v1267
    %v1332 = vcvt.s32.f32 %v1268
    %v1333 = vcvt.s32.f32 %v1269
    %v1334 = vcvt.s32.f32 %v1270
    %v1335 = vcvt.s32.f32 %v1271
    %v1336 = vcvt.s32.f32 %v1272
    %v1337 = vcvt.s32.f32 %v1273
    %v1338 = vcvt.s32.f32 %v1274
    %v1339 = vcvt.s32.f32 %v1275
    %v1340 = vcvt.s32.f32 %v1276
    %v1341 = vcvt.s32.f32 %v1277
    %v1342 = vcvt.s32.f32 %v1278
    %v1343 = vcvt.s32.f32 %v1279
    %v1344 = vcvt.s32.f32 %v1280
    %v1345 = vcvt.s32.f32 %v1281
    %v1346 = vcvt.s32.f32 %v1282
    %v1347 = vpack.c.bf16 %v1285, %v1283
    %v1348 = vpack.c.bf16 %v1286, %v1284
    %v1349 = vpack.c.bf16 %v1289, %v1287
    %v1350 = vpack.c.bf16 %v1290, %v1288
    %v1351 = vpack.c.bf16 %v1293, %v1291
    %v1352 = vpack.c.bf16 %v1294, %v1292
    %v1353 = vpack.c.bf16 %v1297, %v1295
    %v1354 = vpack.c.bf16 %v1298, %v1296
    %v1355 = vpack.c.bf16 %v1301, %v1299
    %v1356 = vpack.c.bf16 %v1302, %v1300
    %v1357 = vpack.c.bf16 %v1305, %v1303
    %v1358 = vpack.c.bf16 %v1306, %v1304
    %v1359 = vpack.c.bf16 %v1309, %v1307
    %v1360 = vpack.c.bf16 %v1310, %v1308
    %v1361 = vpack.c.bf16 %v1313, %v1311
    %v1362 = vpack.c.bf16 %v1314, %v1312
    %v1363 = vpack.c.bf16 %v1317, %v1315
    %v1364 = vpack.c.bf16 %v1318, %v1316
    %v1365 = vpack.c.bf16 %v1321, %v1319
    %v1366 = vpack.c.bf16 %v1322, %v1320
    %v1367 = vpack.c.bf16 %v1325, %v1323
    %v1368 = vpack.c.bf16 %v1326, %v1324
    %v1369 = vpack.c.bf16 %v1329, %v1327
    %v1370 = vpack.c.bf16 %v1330, %v1328
    %v1371 = vpack.c.bf16 %v1333, %v1331
    %v1372 = vpack.c.bf16 %v1334, %v1332
    %v1373 = vpack.c.bf16 %v1337, %v1335
    %v1374 = vpack.c.bf16 %v1338, %v1336
    %v1375 = vpack.c.bf16 %v1341, %v1339
    %v1376 = vpack.c.bf16 %v1342, %v1340
    %v1377 = vpack.c.bf16 %v1345, %v1343
    %v1378 = vpack.c.bf16 %v1346, %v1344
    %1379 = vmatprep.subr.bf16.mxu0 %v1348
    %1380 = vmatpush1.bf16.msra.mxu0 %v1347
    %1381 = vmatprep.subr.bf16.mxu0 %v1350
    %1382 = vmatpush1.bf16.msra.mxu0 %v1349
    %1383 = vmatprep.subr.bf16.mxu0 %v1352
    %1384 = vmatpush1.bf16.msra.mxu0 %v1351
    %1385 = vmatprep.subr.bf16.mxu0 %v1354
    %1386 = vmatpush1.bf16.msra.mxu0 %v1353
    %1387 = vmatprep.subr.bf16.mxu0 %v1356
    %1388 = vmatpush1.bf16.msra.mxu0 %v1355
    %1389 = vmatprep.subr.bf16.mxu0 %v1358
    %1390 = vmatpush1.bf16.msra.mxu0 %v1357
    %1391 = vmatprep.subr.bf16.mxu0 %v1360
    %1392 = vmatpush1.bf16.msra.mxu0 %v1359
    %1393 = vmatprep.subr.bf16.mxu0 %v1362
    %1394 = vmatpush1.bf16.msra.mxu0 %v1361
    %1395 = vmatprep.subr.bf16.mxu0 %v1364
    %1396 = vmatpush1.bf16.msra.mxu0 %v1363
    %1397 = vmatprep.subr.bf16.mxu0 %v1366
    %1398 = vmatpush1.bf16.msra.mxu0 %v1365
    %1399 = vmatprep.subr.bf16.mxu0 %v1368
    %1400 = vmatpush1.bf16.msra.mxu0 %v1367
    %1401 = vmatprep.subr.bf16.mxu0 %v1370
    %1402 = vmatpush1.bf16.msra.mxu0 %v1369
    %1403 = vmatprep.subr.bf16.mxu0 %v1372
    %1404 = vmatpush1.bf16.msra.mxu0 %v1371
    %1405 = vmatprep.subr.bf16.mxu0 %v1374
    %1406 = vmatpush1.bf16.msra.mxu0 %v1373
    %1407 = vmatprep.subr.bf16.mxu0 %v1376
    %1408 = vmatpush1.bf16.msra.mxu0 %v1375
    %1409 = vmatprep.subr.bf16.mxu0 %v1378
    %1410 = vmatpush1.bf16.msra.mxu0 %v1377
    %1411 = vmatprep.mubr.bf16.mxu0 %v79
    %1412 = vmatmul.mubr.bf16.gmra.mrb[0].mxu0 %v78
    %v1413 = vpop.f32.mrb[0].mxu0
    %v1414 = vadd.f32 0.0, %v1413
    %v1415 = vpop.f32.mrb[0].mxu0
    %v1416 = vadd.f32 0.0, %v1415
    %v1417 = vpop.f32.mrb[0].mxu0
    %v1418 = vpop.f32.mrb[0].mxu0
    %1419 = vdwg.mxu0
    %v1420 = vsel %vm1143, %v1139, 0.0
    %v1421 = vsel %vm1144, %v1140, 0.0
    %v1422 = vlaneseq
    %v1423 = vshrl.u32 %v1422, 7
    %v1424 = vsub.s32 0, %v1423
    %v1425 = vrot.slane %v1420, %v1424
    %v1426 = vlaneseq
    %v1427 = vshrl.u32 %v1426, 7
    %v1428 = vsub.s32 0, %v1427
    %v1429 = vrot.slane %v1421, %v1428
    %v1430 = vmul.f32 %v1414, %v1425
    %v1431 = vmul.f32 %v1416, %v1429
    %v1432 = vadd.f32 %v1135, %v1430
    %v1433 = vadd.f32 %v1136, %v1431
    %v1434 = vadd.f32 %v1137, %v1420
    %v1435 = vadd.f32 %v1138, %v1421
    %vm1436 = vcmp.gt.f32.partialorder %v1434, 0.999
    %vm1437 = vcmp.gt.f32.partialorder %v1435, 0.999
    %v1438 = vsel %vm1436, 1, 0
    %v1439 = vsel %vm1437, 1, 0
    %v1440 = vcvt.s32.f32 %v1438
    %v1441 = vcvt.s32.f32 %v1439
    %v1442 = vsub.f32 %v1432, 0.5
    %v1443 = vsub.f32 %v1433, 0.5
    %v1444 = vlaneseq
    %v1445 = vshrl.u32 %v1444, 7
    %v1446 = vsub.s32 0, %v1445
    %v1447 = vrot.slane %v1440, %v1446
    %v1448 = vlaneseq
    %v1449 = vshrl.u32 %v1448, 7
    %v1450 = vsub.s32 0, %v1449
    %v1451 = vrot.slane %v1441, %v1450
    %v1452 = vmul.f32 %v1442, %v1447
    %v1453 = vmul.f32 %v1443, %v1451
    %v1454 = vadd.f32 %v1452, 0.5
    %v1455 = vadd.f32 %v1453, 0.5
    %v1458 = vcombine.low %v1432, %v1433
    %v1459 = vrot.slane %v1458, 6
    %v1460 = vrot.slane %v1459, 4
    %v1462 = vadd.f32 %v87, %v1460
    %v1463 = vcombine.high %v1432, %v1433
    %v1464 = vrot.slane %v1463, 7
    %v1466 = vadd.f32 %v94, %v1464
    %v1467 = vmul.f32 %v1462, %v1462
    %v1468 = vmul.f32 %v1466, %v1466
    %v1469 = vadd.f32 %v1467, %v1468
    %v1470 = vmul.f32 %v87, %v87
    %v1471 = vmul.f32 %v94, %v94
    %v1472 = vadd.f32 %v1470, %v1471
    %v1473 = vmul.f32 %v1432, %v1432
    %v1474 = vmul.f32 %v1433, %v1433
    %v1477 = vrot.slane %v1473, 1
    %v1478 = vrot.slane %v1474, 1
    %v1481 = vadd.f32 %v1473, %v1477
    %v1482 = vadd.f32 %v1474, %v1478
    %v1485 = vcombine.low %v1481, %v1482
    %v1486 = vrot.slane %v1485, 6
    %v1487 = vrot.slane %v1486, 4
    %v1489 = vadd.f32 %v1472, %v1487
    %v1490 = vmul.f32 %v1489, 0.01
    %v1491 = vadd.f32 %v1490, 0.5
    %vm1492 = vcmp.gt.f32.partialorder %v1469, %v1491
    %v1493 = vsel %vm1492, 1, 0
    %v1494 = vcvt.s32.f32 %v1493
    %v1495 = vsub.f32 1.0, %v1494
    %v1496 = vrsqrt.pop %v1469
    %v1497 = vmul.f32 %v1469, %v1496
    %vm1498 = vcmp.eq.f32.partialorder %v1469, inf
    %v1499 = vsel %vm1498, %v1469, %v1497
    %vm1500 = vcmp.eq.f32.partialorder %v1469, 0.0
    %v1501 = vand.u32 %v1469, 2147483648
    %v1502 = vsel %vm1500, %v1501, %v1499
    %v1503 = vmul.f32 %v1502, 256.0
    %v1504 = vmax.f32 %v1503, 0.0
    %v1505 = vmin.f32 %v1504, 65535.0
    %v1506 = vrcp.pop 256.0
    %v1507 = vmul.f32 %v1505, %v1506
    %v1508 = vmul.f32 %v1495, 255.0
    %v1509 = vmax.f32 %v1508, 0.0
    %v1510 = vmin.f32 %v1509, 255.0
    %v1511 = vrcp.pop 255.0
    %v1512 = vmul.f32 %v1510, %v1511
    %v1513 = vmul.f32 %v87, 64.0
    %v1514 = vadd.f32 %v1513, 32768.0
    %v1515 = vmax.f32 %v1514, 0.0
    %v1516 = vmin.f32 %v1515, 65535.0
    %v1517 = vadd.f32 %v1516, 0.5
    %v1518 = vfloor.f32 %v1517
    %v1519 = vsub.f32 %v1518, 32768.0
    %v1520 = vrcp.pop 64.0
    %v1521 = vmul.f32 %v1519, %v1520
    %v1522 = vmul.f32 %v94, 64.0
    %v1523 = vadd.f32 %v1522, 32768.0
    %v1524 = vmax.f32 %v1523, 0.0
    %v1525 = vmin.f32 %v1524, 65535.0
    %v1526 = vadd.f32 %v1525, 0.5
    %v1527 = vfloor.f32 %v1526
    %v1528 = vsub.f32 %v1527, 32768.0
    %v1529 = vmul.f32 %v1528, %v1520
    %s1530 = sld [smem:[#allocation4]]
    %v1531 = vstv %s1530
    %v1532 = vmul.f32 %v1531, %v80
    %s1533 = sld [smem:[#allocation4 + $0x1]]
    %v1534 = vstv %s1533
    %v1535 = vmul.f32 %v1534, %v1454
    %v1536 = vmul.f32 %v1534, %v1455
    %v1539 = vcombine.low %v1535, %v1536
    %v1541 = vadd.f32 %v1532, %v1539
    %s1542 = sld [smem:[#allocation4 + $0x2]]
    %v1543 = vstv %s1542
    %v1544 = vmul.f32 %v1543, %v1454
    %v1545 = vmul.f32 %v1543, %v1455
    %v1548 = vcombine.low %v1544, %v1545
    %v1549 = vrot.slane %v1548, 5
    %v1550 = vrot.slane %v1549, 4
    %v1552 = vadd.f32 %v1541, %v1550
    %s1553 = sld [smem:[#allocation4 + $0x3]]
    %v1554 = vstv %s1553
    %v1555 = vmul.f32 %v1554, %v1454
    %v1556 = vmul.f32 %v1554, %v1455
    %v1559 = vcombine.low %v1555, %v1556
    %v1560 = vrot.slane %v1559, 6
    %v1561 = vrot.slane %v1560, 4
    %v1563 = vadd.f32 %v1552, %v1561
    %s1564 = sld [smem:[#allocation4 + $0x4]]
    %v1565 = vstv %s1564
    %v1566 = vmul.f32 %v1565, %v1512
    %v1568 = vrot.slane %v1566, 5
    %v1569 = vrot.slane %v1568, 4
    %v1571 = vadd.f32 %v1563, %v1569
    %s1572 = sld [smem:[#allocation4 + $0x5]]
    %v1573 = vstv %s1572
    %v1574 = vmul.f32 %v1573, %v1507
    %v1576 = vrot.slane %v1574, 5
    %v1577 = vrot.slane %v1576, 4
    %v1579 = vadd.f32 %v1571, %v1577
    %v1580 = vtanh.pop %v1579
    %v1581 = vmul.f32 %v1580, 0.1
    %s1582 = sld [smem:[#allocation4 + $0x80]]
    %v1583 = vstv %s1582
    %v1584 = vmul.f32 %v1583, %v80
    %s1585 = sld [smem:[#allocation4 + $0x81]]
    %v1586 = vstv %s1585
    %v1587 = vmul.f32 %v1586, %v1454
    %v1588 = vmul.f32 %v1586, %v1455
    %v1591 = vcombine.low %v1587, %v1588
    %v1593 = vadd.f32 %v1584, %v1591
    %s1594 = sld [smem:[#allocation4 + $0x82]]
    %v1595 = vstv %s1594
    %v1596 = vmul.f32 %v1595, %v1454
    %v1597 = vmul.f32 %v1595, %v1455
    %v1600 = vcombine.low %v1596, %v1597
    %v1601 = vrot.slane %v1600, 5
    %v1602 = vrot.slane %v1601, 4
    %v1604 = vadd.f32 %v1593, %v1602
    %s1605 = sld [smem:[#allocation4 + $0x83]]
    %v1606 = vstv %s1605
    %v1607 = vmul.f32 %v1606, %v1454
    %v1608 = vmul.f32 %v1606, %v1455
    %v1611 = vcombine.low %v1607, %v1608
    %v1612 = vrot.slane %v1611, 6
    %v1613 = vrot.slane %v1612, 4
    %v1615 = vadd.f32 %v1604, %v1613
    %s1616 = sld [smem:[#allocation4 + $0x84]]
    %v1617 = vstv %s1616
    %v1618 = vmul.f32 %v1617, %v1512
    %v1620 = vrot.slane %v1618, 5
    %v1621 = vrot.slane %v1620, 4
    %v1623 = vadd.f32 %v1615, %v1621
    %s1624 = sld [smem:[#allocation4 + $0x85]]
    %v1625 = vstv %s1624
    %v1626 = vmul.f32 %v1625, %v1507
    %v1628 = vrot.slane %v1626, 5
    %v1629 = vrot.slane %v1628, 4
    %v1631 = vadd.f32 %v1623, %v1629
    %v1632 = vtanh.pop %v1631
    %v1633 = vmul.f32 %v1632, 0.1
    %s1634 = sld [smem:[#allocation4 + $0x100]]
    %v1635 = vstv %s1634
    %v1636 = vmul.f32 %v1635, %v80
    %s1637 = sld [smem:[#allocation4 + $0x101]]
    %v1638 = vstv %s1637
    %v1639 = vmul.f32 %v1638, %v1454
    %v1640 = vmul.f32 %v1638, %v1455
    %v1643 = vcombine.low %v1639, %v1640
    %v1645 = vadd.f32 %v1636, %v1643
    %s1646 = sld [smem:[#allocation4 + $0x102]]
    %v1647 = vstv %s1646
    %v1648 = vmul.f32 %v1647, %v1454
    %v1649 = vmul.f32 %v1647, %v1455
    %v1652 = vcombine.low %v1648, %v1649
    %v1653 = vrot.slane %v1652, 5
    %v1654 = vrot.slane %v1653, 4
    %v1656 = vadd.f32 %v1645, %v1654
    %s1657 = sld [smem:[#allocation4 + $0x103]]
    %v1658 = vstv %s1657
    %v1659 = vmul.f32 %v1658, %v1454
    %v1660 = vmul.f32 %v1658, %v1455
    %v1663 = vcombine.low %v1659, %v1660
    %v1664 = vrot.slane %v1663, 6
    %v1665 = vrot.slane %v1664, 4
    %v1667 = vadd.f32 %v1656, %v1665
    %s1668 = sld [smem:[#allocation4 + $0x104]]
    %v1669 = vstv %s1668
    %v1670 = vmul.f32 %v1669, %v1512
    %v1672 = vrot.slane %v1670, 5
    %v1673 = vrot.slane %v1672, 4
    %v1675 = vadd.f32 %v1667, %v1673
    %s1676 = sld [smem:[#allocation4 + $0x105]]
    %v1677 = vstv %s1676
    %v1678 = vmul.f32 %v1677, %v1507
    %v1680 = vrot.slane %v1678, 5
    %v1681 = vrot.slane %v1680, 4
    %v1683 = vadd.f32 %v1675, %v1681
    %v1684 = vtanh.pop %v1683
    %v1685 = vmul.f32 %v1684, 0.1
    %v1686 = vadd.f32 %v80, %v1581
    %v1687 = vsub.f32 %v1454, 0.5
    %v1688 = vsub.f32 %v1455, 0.5
    %v1690 = vlaneseq
    %v1691 = vshrl.u32 %v1690, 7
    %v1692 = vsub.s32 1, %v1691
    %v1693 = vrot.slane %v1512, %v1692
    %v1694 = vlaneseq
    %v1695 = vshrl.u32 %v1694, 7
    %v1696 = vsub.s32 5, %v1695
    %v1697 = vrot.slane %v1512, %v1696
    %v1700 = vmul.f32 %v1687, %v1693
    %v1701 = vmul.f32 %v1688, %v1697
    %v1702 = vadd.f32 %v1700, 0.5
    %v1703 = vadd.f32 %v1701, 0.5
    %v1705 = vlaneseq
    %v1706 = vshrl.u32 %v1705, 7
    %v1707 = vsub.s32 0, %v1706
    %v1708 = vrot.slane %v1633, %v1707
    %v1709 = vlaneseq
    %v1710 = vshrl.u32 %v1709, 7
    %v1711 = vsub.s32 4, %v1710
    %v1712 = vrot.slane %v1633, %v1711
    %v1715 = vadd.f32 %v1702, %v1708
    %v1716 = vadd.f32 %v1703, %v1712
    %v1718 = vlaneseq
    %v1719 = vshrl.u32 %v1718, 7
    %v1720 = vsub.s32 0, %v1719
    %v1721 = vrot.slane %v1685, %v1720
    %v1722 = vlaneseq
    %v1723 = vshrl.u32 %v1722, 7
    %v1724 = vsub.s32 4, %v1723
    %v1725 = vrot.slane %v1685, %v1724
    %v1728 = vadd.f32 %v1702, %v1721
    %v1729 = vadd.f32 %v1703, %v1725
    %v1731 = vlaneseq
    %v1732 = vshrl.u32 %v1731, 7
    %v1733 = vsub.s32 0, %v1732
    %v1734 = vrot.slane %v1686, %v1733
    %v1735 = vlaneseq
    %v1736 = vshrl.u32 %v1735, 7
    %v1737 = vsub.s32 4, %v1736
    %v1738 = vrot.slane %v1686, %v1737
    %v1743 = vrot.slane %v1454, 5
    %v1744 = vrot.slane %v1455, 5
    %v1748 = vlaneseq
    %v1749 = vshrl.u32 %v1748, 7
    %v1750 = vsub.s32 1, %v1749
    %v1751 = vrot.slane %v1521, %v1750
    %v1752 = vlaneseq
    %v1753 = vshrl.u32 %v1752, 7
    %v1754 = vsub.s32 5, %v1753
    %v1755 = vrot.slane %v1521, %v1754
    %v1759 = vlaneseq
    %v1760 = vshrl.u32 %v1759, 7
    %v1761 = vsub.s32 1, %v1760
    %v1762 = vrot.slane %v1529, %v1761
    %v1763 = vlaneseq
    %v1764 = vshrl.u32 %v1763, 7
    %v1765 = vsub.s32 5, %v1764
    %v1766 = vrot.slane %v1529, %v1765
    %v1770 = vlaneseq
    %v1771 = vshrl.u32 %v1770, 7
    %v1772 = vsub.s32 1, %v1771
    %v1773 = vrot.slane %v1507, %v1772
    %v1774 = vlaneseq
    %v1775 = vshrl.u32 %v1774, 7
    %v1776 = vsub.s32 5, %v1775
    %v1777 = vrot.slane %v1507, %v1776
    %vm1780 = vcmask 1040384
    %v1781 = vsel %vm1780, %v1734, %v1715
    %v1782 = vsel %vm1780, %v1738, %v1716
    %vm1783 = vcmask 1041408
    %v1784 = vsel %vm1783, %v1781, %v1728
    %v1785 = vsel %vm1783, %v1782, %v1729
    %v1786 = vsel %vm72, %v1784, %v1743
    %v1787 = vsel %vm72, %v1785, %v1744
    %vm1788 = vcmask 1045504
    %v1789 = vsel %vm1788, %v1786, %v1751
    %v1790 = vsel %vm1788, %v1787, %v1755
    %vm1791 = vcmask 1046528
    %v1792 = vsel %vm1791, %v1789, %v1762
    %v1793 = vsel %vm1791, %v1790, %v1766
    %v1794 = vsel %vm1780, %v1773, %v1693
    %v1795 = vsel %vm1780, %v1777, %v1697
    %v1796 = vsel %vm1783, %v1794, 0.0
    %v1797 = vsel %vm1783, %v1795, 0.0
    %1798 = vst [vmem:[#allocation8] sm:$0xff] %v1792
    %1799 = vst [vmem:[#allocation8 + $0x8] sm:$0xff] %v1793
    %1800 = vst [vmem:[#allocation8 + $0x10] sm:$0xff] %v1796
    %1801 = vst [vmem:[#allocation8 + $0x18] sm:$0xff] %v1797
    // Predicated region
    $region14: #{tpu_custom_call.1} parent=1 // pred_check
      _
    $region15: #{tpu_custom_call.1} parent=1 // pred_check_branch
      %1803 = sbr.rel (0) target = $region17
    $region16: #{tpu_custom_call.1} parent=1 // pred_region
      %s1805 = ssub.s32 512, 512
      %1806 = vsyncadd [#allocation7], %s1805
      %s1807 = sshll.u32 [#allocation8], 4
      %s1808 = int_to_ptr.vmem [resolvable:$true] %s1807
      %1813 = dma.vmem_to_hbm [thread:$0]  %s1808, 512, %s4, [#allocation7], 256, 256, 16
    $region17: #{tpu_custom_call.1} parent=1 // pred_fallthru
      _
    // Predicated region
    $region18: #{tpu_custom_call.1} parent=1 // pred_check
      _
    $region19: #{tpu_custom_call.1} parent=1 // pred_check_branch
      %1815 = sbr.rel (0) target = $region21
    $region20: #{tpu_custom_call.1} parent=1 // pred_region
      %1816 = dma.done [#allocation7], 512
    $region21: #{tpu_custom_call.1} parent=1 // pred_fallthru
      _
    %1817 = vsyncpa [#allocation6], 1
    %1818 = vsyncpa [#allocation7], 1

</llo_original>
